<compile_context>
chip_gen: v7x
topology: tpu7x:2x2x1
jax: 0.10.0
libtpu: 0.0.40
codegen_flags: <defaults>
</compile_context>

<pallas_src>
import math
import functools

import jax
import jax.numpy as jnp
from jax import lax
from jax.experimental import pallas as pl
from jax.experimental.pallas import tpu as pltpu


# ----------------------------------------------------------------------------- helpers
def _softplus(x):
    return jnp.maximum(x, 0.0) + jnp.log(1.0 + jnp.exp(-jnp.abs(x)))


def _sigmoid(x):
    return 1.0 / (1.0 + jnp.exp(-x))


def _round_up(x, m):
    return ((x + m - 1) // m) * m


# ----------------------------------------------------------------------------- kernel 1: fused grid_sample + mean + decoder MLP
def _sample_decode_kernel(coords_ref, planes_ref, w1_ref, b1_ref, w2_ref, b2_ref,
                          out_ref, *, H, W, n_planes):
    # coords_ref: (1, P, 2, TM) f32 unnormalized pixel coords (ix, iy), M lane-dense
    # planes_ref: (1, C, P*H*W) bf16  (all planes concatenated on the contraction axis)
    # w1_ref: (hidden, C) bf16 with the 1/P mean folded in; b1_ref: (hidden, 1) f32
    # w2_ref: (out_dim, hidden) bf16; b2_ref: (out_dim, 1) f32
    # out_ref: (1, out_dim, TM) f32   row 0 = sigma, rows 1: = rgb
    crd = coords_ref[0]                       # (P, 2, TM)
    tm = crd.shape[-1]

    ix = jnp.clip(crd[:, 0, :], -2.0, W + 1.0)   # (P, TM)
    iy = jnp.clip(crd[:, 1, :], -2.0, H + 1.0)
    x0f = jnp.floor(ix)
    y0f = jnp.floor(iy)
    fx = ix - x0f                              # (P, TM)
    fy = iy - y0f
    x0 = x0f.astype(jnp.int32)
    y0 = y0f.astype(jnp.int32)

    # Factorized one-hot bilinear weights: compare/select only over (P,W,TM)+(P,H,TM).
    # Out-of-bounds corners never match a pixel index -> weight 0 == padding_mode='zeros'.
    w_idx = lax.broadcasted_iota(jnp.int32, (n_planes, W, tm), 1)
    h_idx = lax.broadcasted_iota(jnp.int32, (n_planes, H, tm), 1)
    x0b = x0[:, None, :]
    fxb = fx[:, None, :]
    y0b = y0[:, None, :]
    fyb = fy[:, None, :]
    wx = jnp.where(w_idx == x0b, 1.0 - fxb,
                   jnp.where(w_idx == x0b + 1, fxb, 0.0))        # (P, W, TM)
    wy = jnp.where(h_idx == y0b, 1.0 - fyb,
                   jnp.where(h_idx == y0b + 1, fyb, 0.0))        # (P, H, TM)

    # Single outer-product multiply -> (P, H, W, TM) -> (P*H*W, TM), then ONE gather
    # matmul over all planes (mean over planes is folded into w1).
    wmat = wy[:, :, None, :] * wx[:, None, :, :]                 # (P, H, W, TM)
    wflat = wmat.reshape(n_planes * H * W, tm).astype(jnp.bfloat16)

    feat = jnp.dot(planes_ref[0], wflat,
                   preferred_element_type=jnp.float32)           # (C, TM) f32

    h = jnp.dot(w1_ref[...], feat.astype(jnp.bfloat16),
                preferred_element_type=jnp.float32) + b1_ref[...]
    h = _softplus(h)                                             # (hidden, TM)
    o = jnp.dot(w2_ref[...], h.astype(jnp.bfloat16),
                preferred_element_type=jnp.float32) + b2_ref[...]

    out_ref[0, 0:1, :] = o[0:1, :]                               # sigma
    out_ref[0, 1:, :] = _sigmoid(o[1:, :]) * (1.0 + 2 * 0.001) - 0.001   # rgb


def _prepare_coords(plane_axes, coordinates, box_warp, H, W, m_pad):
    # coordinates: (N, M, 3) -> (N, P, 2, m_pad) unnormalized (ix, iy), M lane-dense
    N, M, _ = coordinates.shape
    coords = coordinates * (2.0 / box_warp)
    inv_planes = jnp.linalg.inv(plane_axes)                           # (P, 3, 3)
    proj = jnp.einsum('nmc,pcd->npmd', coords, inv_planes)[..., :2]   # (N, P, M, 2)
    # align_corners=False unnormalization (same as torch grid_sample)
    ix = ((proj[..., 0] + 1.0) * W - 1.0) * 0.5
    iy = ((proj[..., 1] + 1.0) * H - 1.0) * 0.5
    cat = jnp.stack([ix, iy], axis=2).astype(jnp.float32)             # (N, P, 2, M)
    return jnp.pad(cat, ((0, 0), (0, 0), (0, 0), (0, m_pad - M)))


def run_model(plane_axes, planes, decoder_params, sample_coordinates,
              sample_directions, options, m_tile=512):
    # sample_directions ignored (EG3D OSGDecoder ignores view directions)
    assert options.get('density_noise', 0) == 0, \
        "density_noise > 0 not supported"  # TODO(synk): randn sigma noise injection
    del sample_directions
    N, n_planes, C, H, W = planes.shape
    M = sample_coordinates.shape[1]
    m_tile = max(128, min(m_tile, _round_up(M, 128)))
    m_pad = _round_up(M, m_tile)

    coords = _prepare_coords(plane_axes, sample_coordinates, options['box_warp'],
                             H, W, m_pad)
    # Lay out planes as (N, C, P*H*W) bf16 so the gather is one matmul per M tile.
    planes_cat = jnp.transpose(planes.reshape(N, n_planes, C, H * W), (0, 2, 1, 3))
    planes_cat = planes_cat.reshape(N, C, n_planes * H * W).astype(jnp.bfloat16)

    w1, b1, w2, b2 = decoder_params
    hidden = w1.shape[1]
    out_dim = w2.shape[1]
    # transposed weights (M sits on the MXU N side); mean over planes folded into w1
    w1m = (jnp.transpose(w1) / float(n_planes)).astype(jnp.bfloat16)   # (hidden, C)
    b1t = jnp.transpose(b1).astype(jnp.float32)                        # (hidden, 1)
    w2t = jnp.transpose(w2).astype(jnp.bfloat16)                       # (out_dim, hidden)
    b2t = jnp.transpose(b2).astype(jnp.float32)                        # (out_dim, 1)

    kernel = functools.partial(_sample_decode_kernel, H=H, W=W, n_planes=n_planes)
    out = pl.pallas_call(
        kernel,
        out_shape=jax.ShapeDtypeStruct((N, out_dim, m_pad), jnp.float32),
        grid=(N, m_pad // m_tile),
        in_specs=[
            pl.BlockSpec((1, n_planes, 2, m_tile), lambda n, m: (n, 0, 0, m)),
            # plane tile constant across M tiles -> stays VMEM-resident per batch element
            pl.BlockSpec((1, C, n_planes * H * W), lambda n, m: (n, 0, 0)),
            pl.BlockSpec((hidden, C), lambda n, m: (0, 0)),
            pl.BlockSpec((hidden, 1), lambda n, m: (0, 0)),
            pl.BlockSpec((out_dim, hidden), lambda n, m: (0, 0)),
            pl.BlockSpec((out_dim, 1), lambda n, m: (0, 0)),
        ],
        out_specs=pl.BlockSpec((1, out_dim, m_tile), lambda n, m: (n, 0, m)),
        compiler_params=pltpu.CompilerParams(
            dimension_semantics=("parallel", "parallel"),
            vmem_limit_bytes=48 * 1024 * 1024),
    )(coords, planes_cat, w1m, b1t, w2t, b2t)

    o = out[:, :, :M]                                                  # drop M padding
    return {'rgb': jnp.transpose(o[:, 1:, :], (0, 2, 1)),
            'sigma': jnp.transpose(o[:, 0:1, :], (0, 2, 1))}


# ----------------------------------------------------------------------------- kernel 2: MipRayMarcher2 (ray-last layout)
def _ray_marcher_kernel(c_ref, s_ref, d_ref, mm_ref, rgb_ref, dep_ref, w_ref):
    # c_ref: (Crgb, S, RT); s_ref/d_ref: (S, RT); mm_ref: (2,) f32 in SMEM
    c = c_ref[...]
    sg = s_ref[...]
    d = d_ref[...]

    deltas = d[1:, :] - d[:-1, :]                     # (Sm1, RT)
    s_mid = (sg[:-1, :] + sg[1:, :]) * 0.5
    d_mid = (d[:-1, :] + d[1:, :]) * 0.5

    s_mid = _softplus(s_mid - 1.0)                    # clamp_mode == 'softplus'
    density_delta = s_mid * deltas
    alpha = 1.0 - jnp.exp(-density_delta)             # (Sm1, RT), in [0, 1)

    # exclusive cumprod of (1 - alpha + 1e-10): exclusive log-space cumsum done as a
    # single strictly-lower-triangular ones matmul on the otherwise-idle MXU.
    log_t = jnp.log(1.0 - alpha + 1e-10)
    sm1 = log_t.shape[0]
    row = lax.broadcasted_iota(jnp.int32, (sm1, sm1), 0)
    col = lax.broadcasted_iota(jnp.int32, (sm1, sm1), 1)
    tril = (col < row).astype(jnp.float32)            # strictly lower-triangular ones
    acc = jnp.dot(tril, log_t, preferred_element_type=jnp.float32)
    weights = alpha * jnp.exp(acc)                    # (Sm1, RT)

    # composite rgb: static loop over the 3 color channels keeps everything 2-D
    rgb_rows = []
    for ch in range(c.shape[0]):
        c_mid_ch = (c[ch, :-1, :] + c[ch, 1:, :]) * 0.5
        rgb_rows.append(jnp.sum(c_mid_ch * weights, axis=0, keepdims=True))
    comp_rgb = jnp.concatenate(rgb_rows, axis=0)      # (Crgb, RT)

    wtot = jnp.sum(weights, axis=0, keepdims=True)    # (1, RT)
    wd = jnp.sum(weights * d_mid, axis=0, keepdims=True)
    # zero total weight -> inf (matches torch nan_to_num(inf)), then clamp
    comp_depth = jnp.where(wtot > 0.0, wd / jnp.maximum(wtot, 1e-30), jnp.inf)
    comp_depth = jnp.clip(comp_depth, mm_ref[0], mm_ref[1])

    rgb_ref[...] = comp_rgb * 2.0 - 1.0
    dep_ref[...] = comp_depth
    w_ref[...] = weights


def mip_ray_marcher(colors, densities, depths, rendering_options, ray_tile=512):
    assert rendering_options['clamp_mode'] == 'softplus', \
        "only clamp_mode == 'softplus' is supported"
    assert not rendering_options.get('white_back', False), \
        "white_back=True not supported"  # TODO(synk): white_back compositing path
    N, R, S, Crgb = colors.shape
    NR = N * R
    ray_tile = max(128, min(ray_tile, _round_up(NR, 128)))
    nr_pad = _round_up(NR, ray_tile)
    pad = nr_pad - NR

    # TODO(synk): emit (channels, S, rays) directly from run_model to drop these
    #             wrapper-side relayouts at production R*S.
    c_t = jnp.transpose(colors.reshape(NR, S, Crgb), (2, 1, 0)).astype(jnp.float32)
    s_t = jnp.transpose(densities.reshape(NR, S), (1, 0)).astype(jnp.float32)
    d_t = jnp.transpose(depths.reshape(NR, S), (1, 0)).astype(jnp.float32)
    c_t = jnp.pad(c_t, ((0, 0), (0, 0), (0, pad)))
    s_t = jnp.pad(s_t, ((0, 0), (0, pad)))
    d_t = jnp.pad(d_t, ((0, 0), (0, pad)))
    mm = jnp.stack([jnp.min(depths), jnp.max(depths)]).astype(jnp.float32)   # (2,)

    sm1 = S - 1
    rgb_t, dep_t, w_t = pl.pallas_call(
        _ray_marcher_kernel,
        out_shape=(jax.ShapeDtypeStruct((Crgb, nr_pad), jnp.float32),
                   jax.ShapeDtypeStruct((1, nr_pad), jnp.float32),
                   jax.ShapeDtypeStruct((sm1, nr_pad), jnp.float32)),
        grid=(nr_pad // ray_tile,),
        in_specs=[pl.BlockSpec((Crgb, S, ray_tile), lambda r: (0, 0, r)),
                  pl.BlockSpec((S, ray_tile), lambda r: (0, r)),
                  pl.BlockSpec((S, ray_tile), lambda r: (0, r)),
                  pl.BlockSpec(memory_space=pltpu.MemorySpace.SMEM)],
        out_specs=(pl.BlockSpec((Crgb, ray_tile), lambda r: (0, r)),
                   pl.BlockSpec((1, ray_tile), lambda r: (0, r)),
                   pl.BlockSpec((sm1, ray_tile), lambda r: (0, r))),
        compiler_params=pltpu.CompilerParams(
            dimension_semantics=("parallel",),
            vmem_limit_bytes=32 * 1024 * 1024),
    )(c_t, s_t, d_t, mm)

    rgb = jnp.transpose(rgb_t[:, :NR], (1, 0)).reshape(N, R, Crgb)
    depth = jnp.transpose(dep_t[:, :NR], (1, 0)).reshape(N, R, 1)
    weights = jnp.transpose(w_t[:, :NR], (1, 0)).reshape(N, R, sm1, 1)
    return rgb, depth, weights


# ----------------------------------------------------------------------------- plane axes / sampling glue
def generate_planes():
    # eg3d_projection mode
    # TODO(synk): lpff_projection mode not implemented.
    return jnp.array([[[1, 0, 0], [0, 1, 0], [0, 0, 1]],
                      [[1, 0, 0], [0, 0, 1], [0, 1, 0]],
                      [[0, 0, 1], [1, 0, 0], [0, 1, 0]]], dtype=jnp.float32)


def sample_stratified(key, ray_origins, ray_start, ray_end, depth_resolution,
                      disparity_space_sampling=False):
    assert not disparity_space_sampling, "disparity_space_sampling not supported"
    N, M, _ = ray_origins.shape
    depths = jnp.linspace(ray_start, ray_end, depth_resolution, dtype=jnp.float32)
    depths = jnp.broadcast_to(depths.reshape(1, 1, depth_resolution, 1),
                              (N, M, depth_resolution, 1))
    depth_delta = (ray_end - ray_start) / (depth_resolution - 1)
    depths = depths + jax.random.uniform(key, depths.shape, dtype=jnp.float32) * depth_delta
    return depths


def sample_pdf(key, bins, weights, N_importance, det=False, eps=1e-5):
    N_rays, N_samples_ = weights.shape
    weights = weights + eps
    pdf = weights / jnp.sum(weights, -1, keepdims=True)
    cdf = jnp.cumsum(pdf, -1)
    cdf = jnp.concatenate([jnp.zeros_like(cdf[:, :1]), cdf], -1)
    if det:
        u = jnp.broadcast_to(jnp.linspace(0.0, 1.0, N_importance), (N_rays, N_importance))
    else:
        u = jax.random.uniform(key, (N_rays, N_importance), dtype=jnp.float32)
    inds = jax.vmap(lambda c, uu: jnp.searchsorted(c, uu, side='right'))(cdf, u)
    below = jnp.maximum(inds - 1, 0)
    above = jnp.minimum(inds, N_samples_)
    inds_sampled = jnp.stack([below, above], -1).reshape(N_rays, 2 * N_importance)
    cdf_g = jnp.take_along_axis(cdf, inds_sampled, axis=1).reshape(N_rays, N_importance, 2)
    bins_g = jnp.take_along_axis(bins, inds_sampled, axis=1).reshape(N_rays, N_importance, 2)
    denom = cdf_g[..., 1] - cdf_g[..., 0]
    denom = jnp.where(denom < eps, 1.0, denom)
    samples = bins_g[..., 0] + (u - cdf_g[..., 0]) / denom * (bins_g[..., 1] - bins_g[..., 0])
    return samples


def sample_importance(key, z_vals, weights, N_importance):
    B, R, S, _ = z_vals.shape
    z = z_vals.reshape(B * R, S)
    w = weights.reshape(B * R, -1)
    w = jnp.pad(w, ((0, 0), (1, 1)), constant_values=-jnp.inf)
    w = jnp.maximum(w[:, :-1], w[:, 1:])              # max_pool1d(kernel=2, stride=1, padding=1)
    w = (w[:, :-1] + w[:, 1:]) * 0.5                  # avg_pool1d(kernel=2, stride=1)
    w = w + 0.01
    z_mid = 0.5 * (z[:, :-1] + z[:, 1:])
    samples = sample_pdf(key, z_mid, w[:, 1:-1], N_importance)
    return samples.reshape(B, R, N_importance, 1)


def unify_samples(depths1, colors1, densities1, depths2, colors2, densities2):
    all_depths = jnp.concatenate([depths1, depths2], axis=-2)
    all_colors = jnp.concatenate([colors1, colors2], axis=-2)
    all_densities = jnp.concatenate([densities1, densities2], axis=-2)
    indices = jnp.argsort(all_depths, axis=-2)
    all_depths = jnp.take_along_axis(all_depths, indices, axis=-2)
    all_colors = jnp.take_along_axis(
        all_colors, jnp.broadcast_to(indices, all_colors.shape), axis=-2)
    all_densities = jnp.take_along_axis(
        all_densities, jnp.broadcast_to(indices, all_densities.shape), axis=-2)
    return all_depths, all_colors, all_densities


# ----------------------------------------------------------------------------- forward
def importance_renderer_forward(key, planes, decoder_params, ray_origins, ray_directions,
                                rendering_options):
    plane_axes = generate_planes()
    # TODO(synk): 'auto' ray_start/ray_end (get_ray_limits_box) not implemented.
    assert rendering_options['ray_start'] != 'auto', "'auto' ray bounds not supported"
    k_strat, k_imp = jax.random.split(key)

    depths_coarse = sample_stratified(
        k_strat, ray_origins, rendering_options['ray_start'], rendering_options['ray_end'],
        rendering_options['depth_resolution'], rendering_options['disparity_space_sampling'])

    B, R, Sc, _ = depths_coarse.shape
    sample_coordinates = (ray_origins[:, :, None, :]
                          + depths_coarse * ray_directions[:, :, None, :]).reshape(B, -1, 3)
    sample_directions = jnp.broadcast_to(ray_directions[:, :, None, :],
                                         (B, R, Sc, 3)).reshape(B, -1, 3)

    out = run_model(plane_axes, planes, decoder_params, sample_coordinates, sample_directions,
                    rendering_options)
    colors_coarse = out['rgb'].reshape(B, R, Sc, -1)
    densities_coarse = out['sigma'].reshape(B, R, Sc, 1)

    N_importance = rendering_options['depth_resolution_importance']
    if N_importance > 0:
        _, _, weights = mip_ray_marcher(colors_coarse, densities_coarse, depths_coarse,
                                        rendering_options)
        depths_fine = sample_importance(k_imp, depths_coarse, weights, N_importance)

        sample_directions = jnp.broadcast_to(ray_directions[:, :, None, :],
                                             (B, R, N_importance, 3)).reshape(B, -1, 3)
        sample_coordinates = (ray_origins[:, :, None, :]
                              + depths_fine * ray_directions[:, :, None, :]).reshape(B, -1, 3)

        out = run_model(plane_axes, planes, decoder_params, sample_coordinates, sample_directions,
                        rendering_options)
        colors_fine = out['rgb'].reshape(B, R, N_importance, -1)
        densities_fine = out['sigma'].reshape(B, R, N_importance, 1)

        all_depths, all_colors, all_densities = unify_samples(
            depths_coarse, colors_coarse, densities_coarse,
            depths_fine, colors_fine, densities_fine)

        rgb_final, depth_final, weights = mip_ray_marcher(all_colors, all_densities, all_depths,
                                                          rendering_options)
    else:
        rgb_final, depth_final, weights = mip_ray_marcher(colors_coarse, densities_coarse,
                                                          depths_coarse, rendering_options)

    return rgb_final, depth_final, weights.sum(axis=2)


# ----------------------------------------------------------------------------- main
if __name__ == "__main__":
    key = jax.random.PRNGKey(0)
    k_planes, k_org, k_dir, k_w1, k_w2, k_fwd = jax.random.split(key, 6)

    N, R = 2, 16                       # batch, rays
    n_planes, C, H, W = 3, 8, 16, 16   # tri-plane feature volume
    hidden, rgb_dim = 32, 3            # decoder hidden width, rgb channels

    planes = jax.random.normal(k_planes, (N, n_planes, C, H, W), dtype=jnp.float32) * 0.1
    ray_origins = jax.random.normal(k_org, (N, R, 3), dtype=jnp.float32) * 0.05
    dirs = jax.random.normal(k_dir, (N, R, 3), dtype=jnp.float32)
    ray_directions = dirs / jnp.linalg.norm(dirs, axis=-1, keepdims=True)

    w1 = jax.random.normal(k_w1, (C, hidden), dtype=jnp.float32) * (1.0 / math.sqrt(C))
    b1 = jnp.zeros((1, hidden), dtype=jnp.float32)
    w2 = jax.random.normal(k_w2, (hidden, 1 + rgb_dim), dtype=jnp.float32) * (1.0 / math.sqrt(hidden))
    b2 = jnp.zeros((1, 1 + rgb_dim), dtype=jnp.float32)
    decoder_params = (w1, b1, w2, b2)

    rendering_options = {
        'ray_start': 0.5, 'ray_end': 1.5,
        'depth_resolution': 12, 'depth_resolution_importance': 12,
        'disparity_space_sampling': False,
        'box_warp': 2.0, 'clamp_mode': 'softplus',
        'density_noise': 0, 'white_back': False,
    }

    rgb_final, depth_final, weight_sum = importance_renderer_forward(
        k_fwd, planes, decoder_params, ray_origins, ray_directions, rendering_options)
    jax.block_until_ready((rgb_final, depth_final, weight_sum))

    assert rgb_final.shape == (N, R, rgb_dim)
    assert depth_final.shape == (N, R, 1)
    assert weight_sum.shape == (N, R, 1)
    assert bool(jnp.all(jnp.isfinite(rgb_final)))
    assert bool(jnp.all(jnp.isfinite(depth_final)))
    assert bool(jnp.all(jnp.isfinite(weight_sum)))
    print("KERNEL_OK")
</pallas_src>

<mosaic_0001>
module attributes {stable_mosaic.version = 11 : i64} {
  func.func @_sample_decode_kernel(%arg0: i32, %arg1: i32, %arg2: memref<1x3x2x256xf32, #tpu.memory_space<vmem>>, %arg3: memref<1x8x768xbf16, #tpu.memory_space<vmem>>, %arg4: memref<32x8xbf16, #tpu.memory_space<vmem>>, %arg5: memref<32x1xf32, #tpu.memory_space<vmem>>, %arg6: memref<4x32xbf16, #tpu.memory_space<vmem>>, %arg7: memref<4x1xf32, #tpu.memory_space<vmem>>, %arg8: memref<1x4x256xf32, #tpu.memory_space<vmem>>) attributes {dimension_semantics = [#tpu.dimension_semantics<parallel>, #tpu.dimension_semantics<parallel>], iteration_bounds = array<i64: 2, 1>, scalar_prefetch = 0 : i64, scratch_operands = 0 : i64, tpu.core_type = #tpu.core_type<tc>, window_params = [{transform_indices = @transform_0, window_bounds = array<i64: 1, 3, 2, 256>}, {transform_indices = @transform_1, window_bounds = array<i64: 1, 8, 768>}, {pipeline_mode = #tpu.pipeline_mode<synchronous>, transform_indices = @transform_2, window_bounds = array<i64: 32, 8>}, {pipeline_mode = #tpu.pipeline_mode<synchronous>, transform_indices = @transform_3, window_bounds = array<i64: 32, 1>}, {pipeline_mode = #tpu.pipeline_mode<synchronous>, transform_indices = @transform_4, window_bounds = array<i64: 4, 32>}, {pipeline_mode = #tpu.pipeline_mode<synchronous>, transform_indices = @transform_5, window_bounds = array<i64: 4, 1>}, {transform_indices = @transform_6, window_bounds = array<i64: 1, 4, 256>}]} {
    %c0 = arith.constant 0 : index
    %c0_0 = arith.constant 0 : index
    %c0_1 = arith.constant 0 : index
    %c0_2 = arith.constant 0 : index
    %0 = vector.load %arg2[%c0, %c0_0, %c0_1, %c0_2] : memref<1x3x2x256xf32, #tpu.memory_space<vmem>>, vector<1x3x2x256xf32>
    %1 = vector.shape_cast %0 : vector<1x3x2x256xf32> to vector<3x2x256xf32>
    %2 = vector.extract_strided_slice %1 {offsets = [0, 0, 0], sizes = [3, 1, 256], strides = [1, 1, 1]} : vector<3x2x256xf32> to vector<3x1x256xf32>
    %3 = vector.shape_cast %2 : vector<3x1x256xf32> to vector<3x256xf32>
    %cst = arith.constant -2.000000e+00 : f32
    %cst_3 = arith.constant 1.700000e+01 : f32
    %4 = vector.broadcast %cst : f32 to vector<3x256xf32>
    %5 = arith.maximumf %4, %3 : vector<3x256xf32>
    %6 = vector.broadcast %cst_3 : f32 to vector<3x256xf32>
    %7 = arith.minimumf %6, %5 : vector<3x256xf32>
    %8 = vector.extract_strided_slice %1 {offsets = [0, 1, 0], sizes = [3, 1, 256], strides = [1, 1, 1]} : vector<3x2x256xf32> to vector<3x1x256xf32>
    %9 = vector.shape_cast %8 : vector<3x1x256xf32> to vector<3x256xf32>
    %cst_4 = arith.constant -2.000000e+00 : f32
    %cst_5 = arith.constant 1.700000e+01 : f32
    %10 = vector.broadcast %cst_4 : f32 to vector<3x256xf32>
    %11 = arith.maximumf %10, %9 : vector<3x256xf32>
    %12 = vector.broadcast %cst_5 : f32 to vector<3x256xf32>
    %13 = arith.minimumf %12, %11 : vector<3x256xf32>
    %14 = math.floor %7 : vector<3x256xf32>
    %15 = math.floor %13 : vector<3x256xf32>
    %16 = arith.subf %7, %14 : vector<3x256xf32>
    %17 = arith.subf %13, %15 : vector<3x256xf32>
    %18 = arith.fptosi %14 : vector<3x256xf32> to vector<3x256xi32>
    %19 = arith.fptosi %15 : vector<3x256xf32> to vector<3x256xi32>
    %20 = tpu.iota {dimensions = array<i32: 1>} : vector<3x16x256xi32>
    %21 = tpu.iota {dimensions = array<i32: 1>} : vector<3x16x256xi32>
    %22 = vector.shape_cast %18 : vector<3x256xi32> to vector<3x1x256xi32>
    %23 = vector.shape_cast %16 : vector<3x256xf32> to vector<3x1x256xf32>
    %24 = vector.shape_cast %19 : vector<3x256xi32> to vector<3x1x256xi32>
    %25 = vector.shape_cast %17 : vector<3x256xf32> to vector<3x1x256xf32>
    %26 = vector.broadcast %22 : vector<3x1x256xi32> to vector<3x16x256xi32>
    %27 = arith.cmpi eq, %20, %26 : vector<3x16x256xi32>
    %cst_6 = arith.constant 1.000000e+00 : f32
    %28 = vector.broadcast %cst_6 : f32 to vector<3x1x256xf32>
    %29 = arith.subf %28, %23 : vector<3x1x256xf32>
    %c1_i32 = arith.constant 1 : i32
    %30 = vector.broadcast %c1_i32 : i32 to vector<3x1x256xi32>
    %31 = arith.addi %22, %30 : vector<3x1x256xi32>
    %32 = vector.broadcast %31 : vector<3x1x256xi32> to vector<3x16x256xi32>
    %33 = arith.cmpi eq, %20, %32 : vector<3x16x256xi32>
    %cst_7 = arith.constant 0.000000e+00 : f32
    %34 = vector.shape_cast %23 : vector<3x1x256xf32> to vector<3x1x256xf32>
    %35 = vector.broadcast %34 : vector<3x1x256xf32> to vector<3x16x256xf32>
    %36 = vector.broadcast %cst_7 : f32 to vector<3x16x256xf32>
    %37 = arith.select %33, %35, %36 : vector<3x16x256xi1>, vector<3x16x256xf32>
    %38 = vector.shape_cast %29 : vector<3x1x256xf32> to vector<3x1x256xf32>
    %39 = vector.broadcast %38 : vector<3x1x256xf32> to vector<3x16x256xf32>
    %40 = arith.select %27, %39, %37 : vector<3x16x256xi1>, vector<3x16x256xf32>
    %41 = vector.broadcast %24 : vector<3x1x256xi32> to vector<3x16x256xi32>
    %42 = arith.cmpi eq, %21, %41 : vector<3x16x256xi32>
    %cst_8 = arith.constant 1.000000e+00 : f32
    %43 = vector.broadcast %cst_8 : f32 to vector<3x1x256xf32>
    %44 = arith.subf %43, %25 : vector<3x1x256xf32>
    %c1_i32_9 = arith.constant 1 : i32
    %45 = vector.broadcast %c1_i32_9 : i32 to vector<3x1x256xi32>
    %46 = arith.addi %24, %45 : vector<3x1x256xi32>
    %47 = vector.broadcast %46 : vector<3x1x256xi32> to vector<3x16x256xi32>
    %48 = arith.cmpi eq, %21, %47 : vector<3x16x256xi32>
    %cst_10 = arith.constant 0.000000e+00 : f32
    %49 = vector.shape_cast %25 : vector<3x1x256xf32> to vector<3x1x256xf32>
    %50 = vector.broadcast %49 : vector<3x1x256xf32> to vector<3x16x256xf32>
    %51 = vector.broadcast %cst_10 : f32 to vector<3x16x256xf32>
    %52 = arith.select %48, %50, %51 : vector<3x16x256xi1>, vector<3x16x256xf32>
    %53 = vector.shape_cast %44 : vector<3x1x256xf32> to vector<3x1x256xf32>
    %54 = vector.broadcast %53 : vector<3x1x256xf32> to vector<3x16x256xf32>
    %55 = arith.select %42, %54, %52 : vector<3x16x256xi1>, vector<3x16x256xf32>
    %56 = vector.shape_cast %55 : vector<3x16x256xf32> to vector<3x16x1x256xf32>
    %57 = vector.shape_cast %40 : vector<3x16x256xf32> to vector<3x1x16x256xf32>
    %58 = vector.broadcast %56 : vector<3x16x1x256xf32> to vector<3x16x16x256xf32>
    %59 = vector.broadcast %57 : vector<3x1x16x256xf32> to vector<3x16x16x256xf32>
    %60 = arith.mulf %58, %59 : vector<3x16x16x256xf32>
    %61 = vector.shape_cast %60 : vector<3x16x16x256xf32> to vector<768x256xf32>
    %62 = arith.truncf %61 : vector<768x256xf32> to vector<768x256xbf16>
    %c0_11 = arith.constant 0 : index
    %c0_12 = arith.constant 0 : index
    %c0_13 = arith.constant 0 : index
    %63 = vector.load %arg3[%c0_11, %c0_12, %c0_13] : memref<1x8x768xbf16, #tpu.memory_space<vmem>>, vector<1x8x768xbf16>
    %64 = vector.shape_cast %63 : vector<1x8x768xbf16> to vector<8x768xbf16>
    %cst_14 = arith.constant dense<0.000000e+00> : vector<8x256xf32>
    %65 = tpu.matmul %64, %62, %cst_14 {dimension_numbers = #tpu.dot_dimension_numbers<[1], [0], [0], [1], [0, 0, 1, 1], [], []>} : vector<8x768xbf16>, vector<768x256xbf16>, vector<8x256xf32> -> vector<8x256xf32>
    %c0_15 = arith.constant 0 : index
    %c0_16 = arith.constant 0 : index
    %66 = vector.load %arg4[%c0_15, %c0_16] : memref<32x8xbf16, #tpu.memory_space<vmem>>, vector<32x8xbf16>
    %67 = arith.truncf %65 : vector<8x256xf32> to vector<8x256xbf16>
    %cst_17 = arith.constant dense<0.000000e+00> : vector<32x256xf32>
    %68 = tpu.matmul %66, %67, %cst_17 {dimension_numbers = #tpu.dot_dimension_numbers<[1], [0], [0], [1], [0, 0, 1, 1], [], []>} : vector<32x8xbf16>, vector<8x256xbf16>, vector<32x256xf32> -> vector<32x256xf32>
    %c0_18 = arith.constant 0 : index
    %c0_19 = arith.constant 0 : index
    %69 = vector.load %arg5[%c0_18, %c0_19] : memref<32x1xf32, #tpu.memory_space<vmem>>, vector<32x1xf32>
    %70 = vector.broadcast %69 : vector<32x1xf32> to vector<32x256xf32>
    %71 = arith.addf %68, %70 : vector<32x256xf32>
    %cst_20 = arith.constant 0.000000e+00 : f32
    %72 = vector.broadcast %cst_20 : f32 to vector<32x256xf32>
    %73 = arith.maximumf %71, %72 : vector<32x256xf32>
    %74 = math.absf %71 : vector<32x256xf32>
    %cst_21 = arith.constant 0.000000e+00 : f32
    %75 = vector.broadcast %cst_21 : f32 to vector<32x256xf32>
    %76 = arith.subf %75, %74 : vector<32x256xf32>
    %77 = math.exp %76 : vector<32x256xf32>
    %cst_22 = arith.constant 1.000000e+00 : f32
    %78 = vector.broadcast %cst_22 : f32 to vector<32x256xf32>
    %79 = arith.addf %78, %77 : vector<32x256xf32>
    %80 = math.log %79 : vector<32x256xf32>
    %81 = arith.addf %73, %80 : vector<32x256xf32>
    %c0_23 = arith.constant 0 : index
    %c0_24 = arith.constant 0 : index
    %82 = vector.load %arg6[%c0_23, %c0_24] : memref<4x32xbf16, #tpu.memory_space<vmem>>, vector<4x32xbf16>
    %83 = arith.truncf %81 : vector<32x256xf32> to vector<32x256xbf16>
    %cst_25 = arith.constant dense<0.000000e+00> : vector<4x256xf32>
    %84 = tpu.matmul %82, %83, %cst_25 {dimension_numbers = #tpu.dot_dimension_numbers<[1], [0], [0], [1], [0, 0, 1, 1], [], []>} : vector<4x32xbf16>, vector<32x256xbf16>, vector<4x256xf32> -> vector<4x256xf32>
    %c0_26 = arith.constant 0 : index
    %c0_27 = arith.constant 0 : index
    %85 = vector.load %arg7[%c0_26, %c0_27] : memref<4x1xf32, #tpu.memory_space<vmem>>, vector<4x1xf32>
    %86 = vector.broadcast %85 : vector<4x1xf32> to vector<4x256xf32>
    %87 = arith.addf %84, %86 : vector<4x256xf32>
    %88 = vector.extract_strided_slice %87 {offsets = [0, 0], sizes = [1, 256], strides = [1, 1]} : vector<4x256xf32> to vector<1x256xf32>
    %c0_28 = arith.constant 0 : index
    %c0_29 = arith.constant 0 : index
    %c0_30 = arith.constant 0 : index
    %89 = vector.load %arg8[%c0_28, %c0_29, %c0_30] : memref<1x4x256xf32, #tpu.memory_space<vmem>>, vector<1x1x256xf32>
    %90 = vector.shape_cast %89 : vector<1x1x256xf32> to vector<1x256xf32>
    %91 = vector.shape_cast %88 : vector<1x256xf32> to vector<1x1x256xf32>
    tpu.vector_store %arg8[%c0_28, %c0_29, %c0_30], %91 {strides = array<i32>} : memref<1x4x256xf32, #tpu.memory_space<vmem>>, vector<1x1x256xf32>,
    %92 = vector.extract_strided_slice %87 {offsets = [1, 0], sizes = [3, 256], strides = [1, 1]} : vector<4x256xf32> to vector<3x256xf32>
    %cst_31 = arith.constant 0.000000e+00 : f32
    %93 = vector.broadcast %cst_31 : f32 to vector<3x256xf32>
    %94 = arith.subf %93, %92 : vector<3x256xf32>
    %95 = math.exp %94 : vector<3x256xf32>
    %cst_32 = arith.constant 1.000000e+00 : f32
    %96 = vector.broadcast %cst_32 : f32 to vector<3x256xf32>
    %97 = arith.addf %96, %95 : vector<3x256xf32>
    %cst_33 = arith.constant 1.000000e+00 : f32
    %98 = vector.broadcast %cst_33 : f32 to vector<3x256xf32>
    %99 = arith.divf %98, %97 : vector<3x256xf32>
    %cst_34 = arith.constant 1.002000e+00 : f32
    %100 = vector.broadcast %cst_34 : f32 to vector<3x256xf32>
    %101 = arith.mulf %99, %100 : vector<3x256xf32>
    %cst_35 = arith.constant 1.000000e-03 : f32
    %102 = vector.broadcast %cst_35 : f32 to vector<3x256xf32>
    %103 = arith.subf %101, %102 : vector<3x256xf32>
    %c0_36 = arith.constant 0 : index
    %c1 = arith.constant 1 : index
    %c0_37 = arith.constant 0 : index
    %104 = vector.load %arg8[%c0_36, %c1, %c0_37] : memref<1x4x256xf32, #tpu.memory_space<vmem>>, vector<1x3x256xf32>
    %105 = vector.shape_cast %104 : vector<1x3x256xf32> to vector<3x256xf32>
    %106 = vector.shape_cast %103 : vector<3x256xf32> to vector<1x3x256xf32>
    tpu.vector_store %arg8[%c0_36, %c1, %c0_37], %106 {strides = array<i32>} : memref<1x4x256xf32, #tpu.memory_space<vmem>>, vector<1x3x256xf32>,
    return
  }
  func.func @transform_0(%arg0: i32, %arg1: i32) -> (i32, i32, i32, i32) {
    %c0_i32 = arith.constant 0 : i32
    %c0_i32_0 = arith.constant 0 : i32
    %c0_i32_1 = arith.constant 0 : i32
    return %arg0, %c0_i32, %c0_i32_0, %arg1 : i32, i32, i32, i32
  }
  func.func @transform_1(%arg0: i32, %arg1: i32) -> (i32, i32, i32) {
    %c0_i32 = arith.constant 0 : i32
    %c0_i32_0 = arith.constant 0 : i32
    %c0_i32_1 = arith.constant 0 : i32
    return %arg0, %c0_i32, %c0_i32_0 : i32, i32, i32
  }
  func.func @transform_2(%arg0: i32, %arg1: i32) -> (i32, i32) {
    %c0_i32 = arith.constant 0 : i32
    %c0_i32_0 = arith.constant 0 : i32
    %c0_i32_1 = arith.constant 0 : i32
    return %c0_i32, %c0_i32_0 : i32, i32
  }
  func.func @transform_3(%arg0: i32, %arg1: i32) -> (i32, i32) {
    %c0_i32 = arith.constant 0 : i32
    %c0_i32_0 = arith.constant 0 : i32
    %c0_i32_1 = arith.constant 0 : i32
    return %c0_i32, %c0_i32_0 : i32, i32
  }
  func.func @transform_4(%arg0: i32, %arg1: i32) -> (i32, i32) {
    %c0_i32 = arith.constant 0 : i32
    %c0_i32_0 = arith.constant 0 : i32
    %c0_i32_1 = arith.constant 0 : i32
    return %c0_i32, %c0_i32_0 : i32, i32
  }
  func.func @transform_5(%arg0: i32, %arg1: i32) -> (i32, i32) {
    %c0_i32 = arith.constant 0 : i32
    %c0_i32_0 = arith.constant 0 : i32
    %c0_i32_1 = arith.constant 0 : i32
    return %c0_i32, %c0_i32_0 : i32, i32
  }
  func.func @transform_6(%arg0: i32, %arg1: i32) -> (i32, i32, i32) {
    %c0_i32 = arith.constant 0 : i32
    %c0_i32_0 = arith.constant 0 : i32
    return %arg0, %c0_i32, %arg1 : i32, i32, i32
  }
}

</mosaic_0001>

<llo_original>
// kernel: tpu_custom_call.1
$region0: #{tpu_custom_call.1}
  #allocation0 [shape = 'u32[]', space=smem, size = 0x4, offset = 0x4, fixed_abs, tag = 'smem constant byte address 0x4 - core index']
  #allocation1 [shape = 'u32[144,128]{1,0:T(1,128)}', space=vmem, size = 0x12000, scoped, tag = 'internal scratch']
  %s0 = inlined_call_operand.hbm [shape: f32[2,3,2,256], index: 0, kind: input, shape index: {}]
  %s1 = inlined_call_operand.vmem [shape: bf16[2,8,768], index: 1, kind: input, shape index: {}]
  %s2 = inlined_call_operand.vmem [shape: bf16[32,8], index: 2, kind: input, shape index: {}]
  %s3 = inlined_call_operand.vmem [shape: f32[32,1], index: 3, kind: input, shape index: {}]
  %s4 = inlined_call_operand.vmem [shape: bf16[4,32], index: 4, kind: input, shape index: {}]
  %s5 = inlined_call_operand.vmem [shape: f32[4,1], index: 5, kind: input, shape index: {}]
  %s6 = inlined_call_operand.hbm [shape: f32[2,4,256], index: 6, kind: output, shape index: {}]
  %s7 = sld [smem:[#allocation0]]
  $region61: #{tpu_custom_call.1} parent=0
    _
  %s9 = ssub.s32 1, %s7
  %s10 = scalar_select 0, %s9, %s7
  $region1: #{tpu_custom_call.1} parent=0
    #allocation2 [shape = 'u8[12288]{0}', space=vmem, size = 0x3000, scoped, tag = 'input window, operand 0']
    #allocation3 [shape = 's32[2]{0}', space=sflag, size = 0x8, scoped, tag = 'scoped memory for tpu_custom_call.1']
    #allocation4 [shape = 's32[2]{0}', space=sflag, size = 0x8, scoped, tag = 'scoped memory for tpu_custom_call.1']
    #allocation5 [shape = 'u8[8192]{0}', space=vmem, size = 0x2000, scoped, tag = 'output window, operand 0']
    %11 = vsyncpa [#allocation3], 0
    %s12 = scalar_lea.sflag [#allocation3], 1
    %13 = vsyncpa %s12, 0
    %14 = vsyncpa [#allocation4], 0
    %s15 = scalar_lea.sflag [#allocation4], 1
    %16 = vsyncpa %s15, 0
    loop: start=0, step=1, limit=4
    $region2: #{tpu_custom_call.1} parent=1 // loop_pre_header
      _
    $region3: #{tpu_custom_call.1} parent=1 // loop_header
      %s18 = sphi 0, %s22
      %p19 = scmp.ge.s32.totalorder %s18, 4
      %s25 = sphi 0, %s37
      %s26 = sphi 0, %s33
      %s27 = sphi 0, %s25
      %s28 = sphi 0, %s26
      %s29 = sphi 0, %s27
      %s30 = sphi 0, %s28
      %s42 = sphi 0, %s44
      %s45 = sphi 0, %s42
      %s46 = sphi 0, %s45
      %s62 = sphi 0, %s46
      %s68 = sphi 0, %s70
      %s71 = sphi 0, %s68
      %s72 = sphi 0, %s71
      %s88 = sphi 0, %s72
      %s92 = sphi 0, %s92
      %s94 = sphi 0, %s92
      %s95 = sphi 0, %s94
      %s109 = sphi 0, %s95
      %s113 = sphi 0, %s113
      %s115 = sphi 0, %s113
      %s116 = sphi 0, %s115
      %s130 = sphi 0, %s116
      %s134 = sphi 0, %s134
      %s136 = sphi 0, %s134
      %s137 = sphi 0, %s136
      %s151 = sphi 0, %s137
      %s155 = sphi 0, %s155
      %s157 = sphi 0, %s155
      %s158 = sphi 0, %s157
      %s172 = sphi 0, %s158
      %s180 = sphi 0, %s182
      %s183 = sphi 0, %s180
      %s184 = sphi 0, %s183
      %s200 = sphi 0, %s184
    $region4: #{tpu_custom_call.1} parent=1 // loop_header_branch
      %21 = sbr.rel (%p19) target = $region8
    $region5: #{tpu_custom_call.1} parent=1 // loop_body
      %s23 = ssub.s32 %s18, 1
      %s24 = ssub.s32 %s18, 2
      %s31 = sadd.s32 1, %s26
      %p32 = scmp.ge.s32.totalorder %s31, 1
      %s33 = scalar_select %p32, 0, %s31
      %s34 = sadd.s32 1, %s25
      %s35 = scalar_select %p32, %s34, %s25
      %p36 = scmp.ge.s32.totalorder %s35, 2
      %s37 = scalar_select %p36, 0, %s35
      %s38 = ssub.s32 %s25, %s37
      %s39 = ssub.s32 %s26, %s33
      %s40 = sor.u32 %s38, %s39
      %p41 = scmp.eq.s32.totalorder %s40, 0
      %s43 = sadd.s32 %s42, 1
      %s44 = scalar_select %p41, %s42, %s43
      %p47 = pneg %p41
      %p48 = scmp.eq.s32.totalorder %s18, 1
      %p49 = por %p47, %p48
      %p50 = scmp.ne.s32.totalorder %s42, %s45
      %p51 = scmp.eq.s32.totalorder %s18, 0
      %p52 = por %p50, %p51
      %p53 = scmp.ne.s32.totalorder %s42, %s45
      %p54 = scmp.eq.s32.totalorder %s23, 1
      %p55 = por %p53, %p54
      %p56 = scmp.ne.s32.totalorder %s45, %s46
      %p57 = scmp.eq.s32.totalorder %s23, 0
      %p58 = por %p56, %p57
      %p59 = scmp.ne.s32.totalorder %s45, %s46
      %p60 = scmp.eq.s32.totalorder %s24, 1
      %p61 = por %p59, %p60
      %p63 = scmp.ne.s32.totalorder %s46, %s62
      %p64 = scmp.eq.s32.totalorder %s24, 0
      %p65 = por %p63, %p64
      %s66 = ssub.s32 %s25, %s37
      %p67 = scmp.eq.s32.totalorder %s66, 0
      %s69 = sadd.s32 %s68, 1
      %s70 = scalar_select %p67, %s68, %s69
      %p73 = pneg %p67
      %p74 = scmp.eq.s32.totalorder %s18, 1
      %p75 = por %p73, %p74
      %p76 = scmp.ne.s32.totalorder %s68, %s71
      %p77 = scmp.eq.s32.totalorder %s18, 0
      %p78 = por %p76, %p77
      %p79 = scmp.ne.s32.totalorder %s68, %s71
      %p80 = scmp.eq.s32.totalorder %s23, 1
      %p81 = por %p79, %p80
      %p82 = scmp.ne.s32.totalorder %s71, %s72
      %p83 = scmp.eq.s32.totalorder %s23, 0
      %p84 = por %p82, %p83
      %p85 = scmp.ne.s32.totalorder %s71, %s72
      %p86 = scmp.eq.s32.totalorder %s24, 1
      %p87 = por %p85, %p86
      %p89 = scmp.ne.s32.totalorder %s72, %s88
      %p90 = scmp.eq.s32.totalorder %s24, 0
      %p91 = por %p89, %p90
      %s93 = sadd.s32 %s92, 1
      %p96 = scmp.eq.s32.totalorder %s18, 1
      %p97 = scmp.ne.s32.totalorder %s92, %s94
      %p98 = scmp.eq.s32.totalorder %s18, 0
      %p99 = por %p97, %p98
      %p100 = scmp.ne.s32.totalorder %s92, %s94
      %p101 = scmp.eq.s32.totalorder %s23, 1
      %p102 = por %p100, %p101
      %p103 = scmp.ne.s32.totalorder %s94, %s95
      %p104 = scmp.eq.s32.totalorder %s23, 0
      %p105 = por %p103, %p104
      %p106 = scmp.ne.s32.totalorder %s94, %s95
      %p107 = scmp.eq.s32.totalorder %s24, 1
      %p108 = por %p106, %p107
      %p110 = scmp.ne.s32.totalorder %s95, %s109
      %p111 = scmp.eq.s32.totalorder %s24, 0
      %p112 = por %p110, %p111
      %s114 = sadd.s32 %s113, 1
      %p117 = scmp.eq.s32.totalorder %s18, 1
      %p118 = scmp.ne.s32.totalorder %s113, %s115
      %p119 = scmp.eq.s32.totalorder %s18, 0
      %p120 = por %p118, %p119
      %p121 = scmp.ne.s32.totalorder %s113, %s115
      %p122 = scmp.eq.s32.totalorder %s23, 1
      %p123 = por %p121, %p122
      %p124 = scmp.ne.s32.totalorder %s115, %s116
      %p125 = scmp.eq.s32.totalorder %s23, 0
      %p126 = por %p124, %p125
      %p127 = scmp.ne.s32.totalorder %s115, %s116
      %p128 = scmp.eq.s32.totalorder %s24, 1
      %p129 = por %p127, %p128
      %p131 = scmp.ne.s32.totalorder %s116, %s130
      %p132 = scmp.eq.s32.totalorder %s24, 0
      %p133 = por %p131, %p132
      %s135 = sadd.s32 %s134, 1
      %p138 = scmp.eq.s32.totalorder %s18, 1
      %p139 = scmp.ne.s32.totalorder %s134, %s136
      %p140 = scmp.eq.s32.totalorder %s18, 0
      %p141 = por %p139, %p140
      %p142 = scmp.ne.s32.totalorder %s134, %s136
      %p143 = scmp.eq.s32.totalorder %s23, 1
      %p144 = por %p142, %p143
      %p145 = scmp.ne.s32.totalorder %s136, %s137
      %p146 = scmp.eq.s32.totalorder %s23, 0
      %p147 = por %p145, %p146
      %p148 = scmp.ne.s32.totalorder %s136, %s137
      %p149 = scmp.eq.s32.totalorder %s24, 1
      %p150 = por %p148, %p149
      %p152 = scmp.ne.s32.totalorder %s137, %s151
      %p153 = scmp.eq.s32.totalorder %s24, 0
      %p154 = por %p152, %p153
      %s156 = sadd.s32 %s155, 1
      %p159 = scmp.eq.s32.totalorder %s18, 1
      %p160 = scmp.ne.s32.totalorder %s155, %s157
      %p161 = scmp.eq.s32.totalorder %s18, 0
      %p162 = por %p160, %p161
      %p163 = scmp.ne.s32.totalorder %s155, %s157
      %p164 = scmp.eq.s32.totalorder %s23, 1
      %p165 = por %p163, %p164
      %p166 = scmp.ne.s32.totalorder %s157, %s158
      %p167 = scmp.eq.s32.totalorder %s23, 0
      %p168 = por %p166, %p167
      %p169 = scmp.ne.s32.totalorder %s157, %s158
      %p170 = scmp.eq.s32.totalorder %s24, 1
      %p171 = por %p169, %p170
      %p173 = scmp.ne.s32.totalorder %s158, %s172
      %p174 = scmp.eq.s32.totalorder %s24, 0
      %p175 = por %p173, %p174
      %s176 = ssub.s32 %s25, %s37
      %s177 = ssub.s32 %s26, %s33
      %s178 = sor.u32 %s176, %s177
      %p179 = scmp.eq.s32.totalorder %s178, 0
      %s181 = sadd.s32 %s180, 1
      %s182 = scalar_select %p179, %s180, %s181
      %p185 = pneg %p179
      %p186 = scmp.eq.s32.totalorder %s18, 1
      %p187 = por %p185, %p186
      %p188 = scmp.ne.s32.totalorder %s180, %s183
      %p189 = scmp.eq.s32.totalorder %s18, 0
      %p190 = por %p188, %p189
      %p191 = scmp.ne.s32.totalorder %s180, %s183
      %p192 = scmp.eq.s32.totalorder %s23, 1
      %p193 = por %p191, %p192
      %p194 = scmp.ne.s32.totalorder %s183, %s184
      %p195 = scmp.eq.s32.totalorder %s23, 0
      %p196 = por %p194, %p195
      %p197 = scmp.ne.s32.totalorder %s183, %s184
      %p198 = scmp.eq.s32.totalorder %s24, 1
      %p199 = por %p197, %p198
      %p201 = scmp.ne.s32.totalorder %s184, %s200
      %p202 = scmp.eq.s32.totalorder %s24, 0
      %p203 = por %p201, %p202
      %p204 = scmp.le.s32.totalorder 1, %s18
      %p205 = scmp.lt.s32.totalorder %s18, 3
      %p206 = pnand %p204, %p205
      %p207 = pneg %p206
      // Predicated region
      $region9: #{tpu_custom_call.1} parent=5 // pred_check
        _
      $region10: #{tpu_custom_call.1} parent=5 // pred_check_branch
        %209 = sbr.rel (%p206) target = $region12
      $region11: #{tpu_custom_call.1} parent=5 // pred_region
        %s210 = ssub.s32 %s18, 1
        // Predicated region
        $region13: #{tpu_custom_call.1} parent=11 // pred_check
          %p211 = pneg %p105
        $region14: #{tpu_custom_call.1} parent=11 // pred_check_branch
          %213 = sbr.rel (%p211) target = $region16
        $region15: #{tpu_custom_call.1} parent=11 // pred_region
          _
        $region16: #{tpu_custom_call.1} parent=11 // pred_fallthru
          _
        // Predicated region
        $region17: #{tpu_custom_call.1} parent=11 // pred_check
          %p214 = pneg %p126
        $region18: #{tpu_custom_call.1} parent=11 // pred_check_branch
          %216 = sbr.rel (%p214) target = $region20
        $region19: #{tpu_custom_call.1} parent=11 // pred_region
          _
        $region20: #{tpu_custom_call.1} parent=11 // pred_fallthru
          _
        // Predicated region
        $region21: #{tpu_custom_call.1} parent=11 // pred_check
          %p217 = pneg %p147
        $region22: #{tpu_custom_call.1} parent=11 // pred_check_branch
          %219 = sbr.rel (%p217) target = $region24
        $region23: #{tpu_custom_call.1} parent=11 // pred_region
          _
        $region24: #{tpu_custom_call.1} parent=11 // pred_fallthru
          _
        // Predicated region
        $region25: #{tpu_custom_call.1} parent=11 // pred_check
          %p220 = pneg %p168
        $region26: #{tpu_custom_call.1} parent=11 // pred_check_branch
          %222 = sbr.rel (%p220) target = $region28
        $region27: #{tpu_custom_call.1} parent=11 // pred_region
          _
        $region28: #{tpu_custom_call.1} parent=11 // pred_fallthru
          _
      $region12: #{tpu_custom_call.1} parent=5 // pred_fallthru
        _
      %p223 = scmp.lt.s32.totalorder %s18, 2
      // Predicated region
      $region29: #{tpu_custom_call.1} parent=5 // pred_check
        %p224 = pneg %p223
      $region30: #{tpu_custom_call.1} parent=5 // pred_check_branch
        %226 = sbr.rel (%p224) target = $region32
      $region31: #{tpu_custom_call.1} parent=5 // pred_region
        // Predicated region
        $region33: #{tpu_custom_call.1} parent=31 // pred_check
          %p227 = pneg %p52
        $region34: #{tpu_custom_call.1} parent=31 // pred_check_branch
          %229 = sbr.rel (%p227) target = $region36
        $region35: #{tpu_custom_call.1} parent=31 // pred_region
          %s230 = sand.u32 %s42, 1
          %s231 = scalar_lea.sflag [#allocation3], %s230
          %s232 = sand.u32 %s42, 1
          %s233 = smul.addr %s232, 12
          %s234 = scalar_lea.vmem [#allocation2], %s233
          %s235 = smul.u32 2, %s26
          %s237 = ssub.s32 192, 192
          %238 = vsyncadd %s231, %s237
          %s239 = smul.addr %s25, 6
          %s240 = sadd.s32 %s235, %s239
          %s241 = smul.addr %s240, 32
          %s242 = scalar_lea.hbm %s0, %s241
          %s243 = sshll.u32 %s234, 4
          %s244 = int_to_ptr.vmem [resolvable:$true] %s243
          %249 = dma.hbm_to_vmem [thread:$0]  %s242, 192, %s244, %s231, 64, 64, 4
        $region36: #{tpu_custom_call.1} parent=31 // pred_fallthru
          _
        // Predicated region
        $region37: #{tpu_custom_call.1} parent=31 // pred_check
          %p250 = pneg %p78
        $region38: #{tpu_custom_call.1} parent=31 // pred_check_branch
          %252 = sbr.rel (%p250) target = $region40
        $region39: #{tpu_custom_call.1} parent=31 // pred_region
          %p253 = scmp.lt.s32.totalorder %s25, 1
          %s254 = scalar_select %p253, %s25, 1
          %s255 = smul.addr %s254, 6
          %s256 = smul.addr %s255, 4
          %s257 = scalar_lea.vmem %s1, %s256
        $region40: #{tpu_custom_call.1} parent=31 // pred_fallthru
          _
      $region32: #{tpu_custom_call.1} parent=5 // pred_fallthru
        _
      %p258 = scmp.le.s32.totalorder 1, %s18
      %p259 = scmp.lt.s32.totalorder %s18, 3
      %p260 = pnand %p258, %p259
      %p261 = pneg %p260
      // Predicated region
      $region41: #{tpu_custom_call.1} parent=5 // pred_check
        _
      $region42: #{tpu_custom_call.1} parent=5 // pred_check_branch
        %263 = sbr.rel (%p260) target = $region44
      $region43: #{tpu_custom_call.1} parent=5 // pred_region
        %s264 = ssub.s32 %s18, 1
        %s265 = sand.u32 %s45, 1
        %s266 = scalar_lea.sflag [#allocation3], %s265
        %s267 = sand.u32 %s45, 1
        %s268 = smul.addr %s267, 12
        %s269 = scalar_lea.vmem [#allocation2], %s268
        // Predicated region
        $region45: #{tpu_custom_call.1} parent=43 // pred_check
          %p270 = pneg %p58
        $region46: #{tpu_custom_call.1} parent=43 // pred_check_branch
          %272 = sbr.rel (%p270) target = $region48
        $region47: #{tpu_custom_call.1} parent=43 // pred_region
          %273 = dma.done %s266, 192
        $region48: #{tpu_custom_call.1} parent=43 // pred_fallthru
          _
        %s274 = sand.u32 %s45, 1
        %s275 = scalar_lea.sflag [#allocation3], %s274
        %s276 = sand.u32 %s45, 1
        %s277 = smul.addr %s276, 12
        %s278 = scalar_lea.vmem [#allocation2], %s277
        %p279 = pneg %p58
        %p280 = pneg %p55
        %p281 = scmp.lt.s32.totalorder %s27, 1
        %s282 = scalar_select %p281, %s27, 1
        %s283 = smul.addr %s282, 6
        %s284 = smul.addr %s283, 4
        %s285 = scalar_lea.vmem %s1, %s284
        %p286 = pneg %p84
        %p287 = pneg %p81
        %p288 = pneg %p105
        %p289 = pneg %p102
        %p290 = pneg %p126
        %p291 = pneg %p123
        %p292 = pneg %p147
        %p293 = pneg %p144
        %p294 = pneg %p168
        %p295 = pneg %p165
        %p296 = pneg %p196
        %p297 = pneg %p193
        %s298 = sand.u32 %s183, 1
        %s299 = scalar_lea.sflag [#allocation4], %s298
        %s300 = sand.u32 %s183, 1
        %s301 = smul.addr %s300, 8
        %s302 = scalar_lea.vmem [#allocation5], %s301
        %s303 = smul.u32 2, %s28
        %p304 = scmp.lt.s32.totalorder %s27, 1
        %s305 = scalar_select %p304, %s27, 1
        %s306 = smul.addr %s305, 6
        %s307 = smul.addr %s306, 4
        %s308 = scalar_lea.vmem %s1, %s307
        %s309 = smul.u32 2, %s28
        %v311 = vld [vmem:[%s269] sm:$0xf]
        %v312 = vld [vmem:[%s269 + $0x4] sm:$0xf]
        %v313 = vld [vmem:[%s269 + $0x8] sm:$0xf]
        %v314 = vmax.f32 %v311, -2.0
        %v315 = vmax.f32 %v312, -2.0
        %v316 = vmax.f32 %v313, -2.0
        %v317 = vmin.f32 %v314, 17.0
        %v318 = vmin.f32 %v315, 17.0
        %v319 = vmin.f32 %v316, 17.0
        %v320 = vfloor.f32 %v317
        %v321 = vfloor.f32 %v318
        %v322 = vfloor.f32 %v319
        %v323 = vsub.f32 %v317, %v320
        %v324 = vsub.f32 %v318, %v321
        %v325 = vsub.f32 %v319, %v322
        %v326 = vcvt.f32.s32.to.zero.pseudo %v320
        %v327 = vcvt.f32.s32.to.zero.pseudo %v321
        %v328 = vcvt.f32.s32.to.zero.pseudo %v322
        %v329 = vlaneseq
        %v330 = vshrl.u32 %v329, 7
        %v331 = vadd.s32 %v330, 8
        %v332 = vlaneseq
        %v333 = vshrl.u32 %v332, 7
        %v334 = vsub.s32 0, %v333
        %v335 = vrot.slane %v326, %v334
        %v336 = vlaneseq
        %v337 = vshrl.u32 %v336, 7
        %v338 = vsub.s32 2, %v337
        %v339 = vrot.slane %v326, %v338
        %v340 = vlaneseq
        %v341 = vshrl.u32 %v340, 7
        %v342 = vsub.s32 0, %v341
        %v343 = vrot.slane %v327, %v342
        %v344 = vlaneseq
        %v345 = vshrl.u32 %v344, 7
        %v346 = vsub.s32 2, %v345
        %v347 = vrot.slane %v327, %v346
        %v348 = vlaneseq
        %v349 = vshrl.u32 %v348, 7
        %v350 = vsub.s32 0, %v349
        %v351 = vrot.slane %v328, %v350
        %v352 = vlaneseq
        %v353 = vshrl.u32 %v352, 7
        %v354 = vsub.s32 2, %v353
        %v355 = vrot.slane %v328, %v354
        %v356 = vlaneseq
        %v357 = vshrl.u32 %v356, 7
        %v358 = vsub.s32 0, %v357
        %v359 = vrot.slane %v335, %v358
        %v360 = vlaneseq
        %v361 = vshrl.u32 %v360, 7
        %v362 = vsub.s32 0, %v361
        %v363 = vrot.slane %v339, %v362
        %v364 = vlaneseq
        %v365 = vshrl.u32 %v364, 7
        %v366 = vsub.s32 0, %v365
        %v367 = vrot.slane %v343, %v366
        %v368 = vlaneseq
        %v369 = vshrl.u32 %v368, 7
        %v370 = vsub.s32 0, %v369
        %v371 = vrot.slane %v347, %v370
        %v372 = vlaneseq
        %v373 = vshrl.u32 %v372, 7
        %v374 = vsub.s32 0, %v373
        %v375 = vrot.slane %v351, %v374
        %v376 = vlaneseq
        %v377 = vshrl.u32 %v376, 7
        %v378 = vsub.s32 0, %v377
        %v379 = vrot.slane %v355, %v378
        %vm380 = vcmp.eq.s32.totalorder %v330, %v359
        %vm381 = vcmp.eq.s32.totalorder %v330, %v363
        %vm382 = vcmp.eq.s32.totalorder %v331, %v359
        %vm383 = vcmp.eq.s32.totalorder %v331, %v363
        %vm384 = vcmp.eq.s32.totalorder %v330, %v367
        %vm385 = vcmp.eq.s32.totalorder %v330, %v371
        %vm386 = vcmp.eq.s32.totalorder %v331, %v367
        %vm387 = vcmp.eq.s32.totalorder %v331, %v371
        %vm388 = vcmp.eq.s32.totalorder %v330, %v375
        %vm389 = vcmp.eq.s32.totalorder %v330, %v379
        %vm390 = vcmp.eq.s32.totalorder %v331, %v375
        %vm391 = vcmp.eq.s32.totalorder %v331, %v379
        %v392 = vsub.f32 1.0, %v323
        %v393 = vsub.f32 1.0, %v324
        %v394 = vsub.f32 1.0, %v325
        %v395 = vadd.s32 %v326, 1
        %v396 = vadd.s32 %v327, 1
        %v397 = vadd.s32 %v328, 1
        %v398 = vlaneseq
        %v399 = vshrl.u32 %v398, 7
        %v400 = vsub.s32 0, %v399
        %v401 = vrot.slane %v395, %v400
        %v402 = vlaneseq
        %v403 = vshrl.u32 %v402, 7
        %v404 = vsub.s32 2, %v403
        %v405 = vrot.slane %v395, %v404
        %v406 = vlaneseq
        %v407 = vshrl.u32 %v406, 7
        %v408 = vsub.s32 0, %v407
        %v409 = vrot.slane %v396, %v408
        %v410 = vlaneseq
        %v411 = vshrl.u32 %v410, 7
        %v412 = vsub.s32 2, %v411
        %v413 = vrot.slane %v396, %v412
        %v414 = vlaneseq
        %v415 = vshrl.u32 %v414, 7
        %v416 = vsub.s32 0, %v415
        %v417 = vrot.slane %v397, %v416
        %v418 = vlaneseq
        %v419 = vshrl.u32 %v418, 7
        %v420 = vsub.s32 2, %v419
        %v421 = vrot.slane %v397, %v420
        %v422 = vlaneseq
        %v423 = vshrl.u32 %v422, 7
        %v424 = vsub.s32 0, %v423
        %v425 = vrot.slane %v401, %v424
        %v426 = vlaneseq
        %v427 = vshrl.u32 %v426, 7
        %v428 = vsub.s32 0, %v427
        %v429 = vrot.slane %v405, %v428
        %v430 = vlaneseq
        %v431 = vshrl.u32 %v430, 7
        %v432 = vsub.s32 0, %v431
        %v433 = vrot.slane %v409, %v432
        %v434 = vlaneseq
        %v435 = vshrl.u32 %v434, 7
        %v436 = vsub.s32 0, %v435
        %v437 = vrot.slane %v413, %v436
        %v438 = vlaneseq
        %v439 = vshrl.u32 %v438, 7
        %v440 = vsub.s32 0, %v439
        %v441 = vrot.slane %v417, %v440
        %v442 = vlaneseq
        %v443 = vshrl.u32 %v442, 7
        %v444 = vsub.s32 0, %v443
        %v445 = vrot.slane %v421, %v444
        %vm446 = vcmp.eq.s32.totalorder %v330, %v425
        %vm447 = vcmp.eq.s32.totalorder %v330, %v429
        %vm448 = vcmp.eq.s32.totalorder %v331, %v425
        %vm449 = vcmp.eq.s32.totalorder %v331, %v429
        %vm450 = vcmp.eq.s32.totalorder %v330, %v433
        %vm451 = vcmp.eq.s32.totalorder %v330, %v437
        %vm452 = vcmp.eq.s32.totalorder %v331, %v433
        %vm453 = vcmp.eq.s32.totalorder %v331, %v437
        %vm454 = vcmp.eq.s32.totalorder %v330, %v441
        %vm455 = vcmp.eq.s32.totalorder %v330, %v445
        %vm456 = vcmp.eq.s32.totalorder %v331, %v441
        %vm457 = vcmp.eq.s32.totalorder %v331, %v445
        %v461 = vlaneseq
        %v462 = vshrl.u32 %v461, 7
        %v463 = vsub.s32 0, %v462
        %v464 = vrot.slane %v323, %v463
        %v465 = vlaneseq
        %v466 = vshrl.u32 %v465, 7
        %v467 = vsub.s32 2, %v466
        %v468 = vrot.slane %v323, %v467
        %v469 = vlaneseq
        %v470 = vshrl.u32 %v469, 7
        %v471 = vsub.s32 0, %v470
        %v472 = vrot.slane %v324, %v471
        %v473 = vlaneseq
        %v474 = vshrl.u32 %v473, 7
        %v475 = vsub.s32 2, %v474
        %v476 = vrot.slane %v324, %v475
        %v477 = vlaneseq
        %v478 = vshrl.u32 %v477, 7
        %v479 = vsub.s32 0, %v478
        %v480 = vrot.slane %v325, %v479
        %v481 = vlaneseq
        %v482 = vshrl.u32 %v481, 7
        %v483 = vsub.s32 2, %v482
        %v484 = vrot.slane %v325, %v483
        %v491 = vlaneseq
        %v492 = vshrl.u32 %v491, 7
        %v493 = vsub.s32 0, %v492
        %v494 = vrot.slane %v464, %v493
        %v495 = vlaneseq
        %v496 = vshrl.u32 %v495, 7
        %v497 = vsub.s32 0, %v496
        %v498 = vrot.slane %v468, %v497
        %v499 = vlaneseq
        %v500 = vshrl.u32 %v499, 7
        %v501 = vsub.s32 0, %v500
        %v502 = vrot.slane %v472, %v501
        %v503 = vlaneseq
        %v504 = vshrl.u32 %v503, 7
        %v505 = vsub.s32 0, %v504
        %v506 = vrot.slane %v476, %v505
        %v507 = vlaneseq
        %v508 = vshrl.u32 %v507, 7
        %v509 = vsub.s32 0, %v508
        %v510 = vrot.slane %v480, %v509
        %v511 = vlaneseq
        %v512 = vshrl.u32 %v511, 7
        %v513 = vsub.s32 0, %v512
        %v514 = vrot.slane %v484, %v513
        %v515 = vsel %vm446, %v494, 0.0
        %v516 = vsel %vm447, %v498, 0.0
        %v517 = vsel %vm448, %v494, 0.0
        %v518 = vsel %vm449, %v498, 0.0
        %v519 = vsel %vm450, %v502, 0.0
        %v520 = vsel %vm451, %v506, 0.0
        %v521 = vsel %vm452, %v502, 0.0
        %v522 = vsel %vm453, %v506, 0.0
        %v523 = vsel %vm454, %v510, 0.0
        %v524 = vsel %vm455, %v514, 0.0
        %v525 = vsel %vm456, %v510, 0.0
        %v526 = vsel %vm457, %v514, 0.0
        %v530 = vlaneseq
        %v531 = vshrl.u32 %v530, 7
        %v532 = vsub.s32 0, %v531
        %v533 = vrot.slane %v392, %v532
        %v534 = vlaneseq
        %v535 = vshrl.u32 %v534, 7
        %v536 = vsub.s32 2, %v535
        %v537 = vrot.slane %v392, %v536
        %v538 = vlaneseq
        %v539 = vshrl.u32 %v538, 7
        %v540 = vsub.s32 0, %v539
        %v541 = vrot.slane %v393, %v540
        %v542 = vlaneseq
        %v543 = vshrl.u32 %v542, 7
        %v544 = vsub.s32 2, %v543
        %v545 = vrot.slane %v393, %v544
        %v546 = vlaneseq
        %v547 = vshrl.u32 %v546, 7
        %v548 = vsub.s32 0, %v547
        %v549 = vrot.slane %v394, %v548
        %v550 = vlaneseq
        %v551 = vshrl.u32 %v550, 7
        %v552 = vsub.s32 2, %v551
        %v553 = vrot.slane %v394, %v552
        %v560 = vlaneseq
        %v561 = vshrl.u32 %v560, 7
        %v562 = vsub.s32 0, %v561
        %v563 = vrot.slane %v533, %v562
        %v564 = vlaneseq
        %v565 = vshrl.u32 %v564, 7
        %v566 = vsub.s32 0, %v565
        %v567 = vrot.slane %v537, %v566
        %v568 = vlaneseq
        %v569 = vshrl.u32 %v568, 7
        %v570 = vsub.s32 0, %v569
        %v571 = vrot.slane %v541, %v570
        %v572 = vlaneseq
        %v573 = vshrl.u32 %v572, 7
        %v574 = vsub.s32 0, %v573
        %v575 = vrot.slane %v545, %v574
        %v576 = vlaneseq
        %v577 = vshrl.u32 %v576, 7
        %v578 = vsub.s32 0, %v577
        %v579 = vrot.slane %v549, %v578
        %v580 = vlaneseq
        %v581 = vshrl.u32 %v580, 7
        %v582 = vsub.s32 0, %v581
        %v583 = vrot.slane %v553, %v582
        %v584 = vsel %vm380, %v563, %v515
        %v585 = vsel %vm381, %v567, %v516
        %v586 = vsel %vm382, %v563, %v517
        %v587 = vsel %vm383, %v567, %v518
        %v588 = vsel %vm384, %v571, %v519
        %v589 = vsel %vm385, %v575, %v520
        %v590 = vsel %vm386, %v571, %v521
        %v591 = vsel %vm387, %v575, %v522
        %v592 = vsel %vm388, %v579, %v523
        %v593 = vsel %vm389, %v583, %v524
        %v594 = vsel %vm390, %v579, %v525
        %v595 = vsel %vm391, %v583, %v526
        %v596 = vlaneseq
        %v597 = vshrl.u32 %v596, 7
        %v598 = vsub.s32 1, %v597
        %v599 = vrot.slane %v326, %v598
        %v600 = vlaneseq
        %v601 = vshrl.u32 %v600, 7
        %v602 = vsub.s32 3, %v601
        %v603 = vrot.slane %v326, %v602
        %v604 = vlaneseq
        %v605 = vshrl.u32 %v604, 7
        %v606 = vsub.s32 1, %v605
        %v607 = vrot.slane %v327, %v606
        %v608 = vlaneseq
        %v609 = vshrl.u32 %v608, 7
        %v610 = vsub.s32 3, %v609
        %v611 = vrot.slane %v327, %v610
        %v612 = vlaneseq
        %v613 = vshrl.u32 %v612, 7
        %v614 = vsub.s32 1, %v613
        %v615 = vrot.slane %v328, %v614
        %v616 = vlaneseq
        %v617 = vshrl.u32 %v616, 7
        %v618 = vsub.s32 3, %v617
        %v619 = vrot.slane %v328, %v618
        %v620 = vlaneseq
        %v621 = vshrl.u32 %v620, 7
        %v622 = vsub.s32 1, %v621
        %v623 = vrot.slane %v599, %v622
        %v624 = vlaneseq
        %v625 = vshrl.u32 %v624, 7
        %v626 = vsub.s32 1, %v625
        %v627 = vrot.slane %v603, %v626
        %v628 = vlaneseq
        %v629 = vshrl.u32 %v628, 7
        %v630 = vsub.s32 1, %v629
        %v631 = vrot.slane %v607, %v630
        %v632 = vlaneseq
        %v633 = vshrl.u32 %v632, 7
        %v634 = vsub.s32 1, %v633
        %v635 = vrot.slane %v611, %v634
        %v636 = vlaneseq
        %v637 = vshrl.u32 %v636, 7
        %v638 = vsub.s32 1, %v637
        %v639 = vrot.slane %v615, %v638
        %v640 = vlaneseq
        %v641 = vshrl.u32 %v640, 7
        %v642 = vsub.s32 1, %v641
        %v643 = vrot.slane %v619, %v642
        %vm644 = vcmp.eq.s32.totalorder %v330, %v623
        %vm645 = vcmp.eq.s32.totalorder %v330, %v627
        %vm646 = vcmp.eq.s32.totalorder %v331, %v623
        %vm647 = vcmp.eq.s32.totalorder %v331, %v627
        %vm648 = vcmp.eq.s32.totalorder %v330, %v631
        %vm649 = vcmp.eq.s32.totalorder %v330, %v635
        %vm650 = vcmp.eq.s32.totalorder %v331, %v631
        %vm651 = vcmp.eq.s32.totalorder %v331, %v635
        %vm652 = vcmp.eq.s32.totalorder %v330, %v639
        %vm653 = vcmp.eq.s32.totalorder %v330, %v643
        %vm654 = vcmp.eq.s32.totalorder %v331, %v639
        %vm655 = vcmp.eq.s32.totalorder %v331, %v643
        %v656 = vlaneseq
        %v657 = vshrl.u32 %v656, 7
        %v658 = vsub.s32 1, %v657
        %v659 = vrot.slane %v395, %v658
        %v660 = vlaneseq
        %v661 = vshrl.u32 %v660, 7
        %v662 = vsub.s32 3, %v661
        %v663 = vrot.slane %v395, %v662
        %v664 = vlaneseq
        %v665 = vshrl.u32 %v664, 7
        %v666 = vsub.s32 1, %v665
        %v667 = vrot.slane %v396, %v666
        %v668 = vlaneseq
        %v669 = vshrl.u32 %v668, 7
        %v670 = vsub.s32 3, %v669
        %v671 = vrot.slane %v396, %v670
        %v672 = vlaneseq
        %v673 = vshrl.u32 %v672, 7
        %v674 = vsub.s32 1, %v673
        %v675 = vrot.slane %v397, %v674
        %v676 = vlaneseq
        %v677 = vshrl.u32 %v676, 7
        %v678 = vsub.s32 3, %v677
        %v679 = vrot.slane %v397, %v678
        %v680 = vlaneseq
        %v681 = vshrl.u32 %v680, 7
        %v682 = vsub.s32 1, %v681
        %v683 = vrot.slane %v659, %v682
        %v684 = vlaneseq
        %v685 = vshrl.u32 %v684, 7
        %v686 = vsub.s32 1, %v685
        %v687 = vrot.slane %v663, %v686
        %v688 = vlaneseq
        %v689 = vshrl.u32 %v688, 7
        %v690 = vsub.s32 1, %v689
        %v691 = vrot.slane %v667, %v690
        %v692 = vlaneseq
        %v693 = vshrl.u32 %v692, 7
        %v694 = vsub.s32 1, %v693
        %v695 = vrot.slane %v671, %v694
        %v696 = vlaneseq
        %v697 = vshrl.u32 %v696, 7
        %v698 = vsub.s32 1, %v697
        %v699 = vrot.slane %v675, %v698
        %v700 = vlaneseq
        %v701 = vshrl.u32 %v700, 7
        %v702 = vsub.s32 1, %v701
        %v703 = vrot.slane %v679, %v702
        %vm704 = vcmp.eq.s32.totalorder %v330, %v683
        %vm705 = vcmp.eq.s32.totalorder %v330, %v687
        %vm706 = vcmp.eq.s32.totalorder %v331, %v683
        %vm707 = vcmp.eq.s32.totalorder %v331, %v687
        %vm708 = vcmp.eq.s32.totalorder %v330, %v691
        %vm709 = vcmp.eq.s32.totalorder %v330, %v695
        %vm710 = vcmp.eq.s32.totalorder %v331, %v691
        %vm711 = vcmp.eq.s32.totalorder %v331, %v695
        %vm712 = vcmp.eq.s32.totalorder %v330, %v699
        %vm713 = vcmp.eq.s32.totalorder %v330, %v703
        %vm714 = vcmp.eq.s32.totalorder %v331, %v699
        %vm715 = vcmp.eq.s32.totalorder %v331, %v703
        %v716 = vlaneseq
        %v717 = vshrl.u32 %v716, 7
        %v718 = vsub.s32 1, %v717
        %v719 = vrot.slane %v323, %v718
        %v720 = vlaneseq
        %v721 = vshrl.u32 %v720, 7
        %v722 = vsub.s32 3, %v721
        %v723 = vrot.slane %v323, %v722
        %v724 = vlaneseq
        %v725 = vshrl.u32 %v724, 7
        %v726 = vsub.s32 1, %v725
        %v727 = vrot.slane %v324, %v726
        %v728 = vlaneseq
        %v729 = vshrl.u32 %v728, 7
        %v730 = vsub.s32 3, %v729
        %v731 = vrot.slane %v324, %v730
        %v732 = vlaneseq
        %v733 = vshrl.u32 %v732, 7
        %v734 = vsub.s32 1, %v733
        %v735 = vrot.slane %v325, %v734
        %v736 = vlaneseq
        %v737 = vshrl.u32 %v736, 7
        %v738 = vsub.s32 3, %v737
        %v739 = vrot.slane %v325, %v738
        %v746 = vlaneseq
        %v747 = vshrl.u32 %v746, 7
        %v748 = vsub.s32 1, %v747
        %v749 = vrot.slane %v719, %v748
        %v750 = vlaneseq
        %v751 = vshrl.u32 %v750, 7
        %v752 = vsub.s32 1, %v751
        %v753 = vrot.slane %v723, %v752
        %v754 = vlaneseq
        %v755 = vshrl.u32 %v754, 7
        %v756 = vsub.s32 1, %v755
        %v757 = vrot.slane %v727, %v756
        %v758 = vlaneseq
        %v759 = vshrl.u32 %v758, 7
        %v760 = vsub.s32 1, %v759
        %v761 = vrot.slane %v731, %v760
        %v762 = vlaneseq
        %v763 = vshrl.u32 %v762, 7
        %v764 = vsub.s32 1, %v763
        %v765 = vrot.slane %v735, %v764
        %v766 = vlaneseq
        %v767 = vshrl.u32 %v766, 7
        %v768 = vsub.s32 1, %v767
        %v769 = vrot.slane %v739, %v768
        %v770 = vsel %vm704, %v749, 0.0
        %v771 = vsel %vm705, %v753, 0.0
        %v772 = vsel %vm706, %v749, 0.0
        %v773 = vsel %vm707, %v753, 0.0
        %v774 = vsel %vm708, %v757, 0.0
        %v775 = vsel %vm709, %v761, 0.0
        %v776 = vsel %vm710, %v757, 0.0
        %v777 = vsel %vm711, %v761, 0.0
        %v778 = vsel %vm712, %v765, 0.0
        %v779 = vsel %vm713, %v769, 0.0
        %v780 = vsel %vm714, %v765, 0.0
        %v781 = vsel %vm715, %v769, 0.0
        %v782 = vlaneseq
        %v783 = vshrl.u32 %v782, 7
        %v784 = vsub.s32 1, %v783
        %v785 = vrot.slane %v392, %v784
        %v786 = vlaneseq
        %v787 = vshrl.u32 %v786, 7
        %v788 = vsub.s32 3, %v787
        %v789 = vrot.slane %v392, %v788
        %v790 = vlaneseq
        %v791 = vshrl.u32 %v790, 7
        %v792 = vsub.s32 1, %v791
        %v793 = vrot.slane %v393, %v792
        %v794 = vlaneseq
        %v795 = vshrl.u32 %v794, 7
        %v796 = vsub.s32 3, %v795
        %v797 = vrot.slane %v393, %v796
        %v798 = vlaneseq
        %v799 = vshrl.u32 %v798, 7
        %v800 = vsub.s32 1, %v799
        %v801 = vrot.slane %v394, %v800
        %v802 = vlaneseq
        %v803 = vshrl.u32 %v802, 7
        %v804 = vsub.s32 3, %v803
        %v805 = vrot.slane %v394, %v804
        %v812 = vlaneseq
        %v813 = vshrl.u32 %v812, 7
        %v814 = vsub.s32 1, %v813
        %v815 = vrot.slane %v785, %v814
        %v816 = vlaneseq
        %v817 = vshrl.u32 %v816, 7
        %v818 = vsub.s32 1, %v817
        %v819 = vrot.slane %v789, %v818
        %v820 = vlaneseq
        %v821 = vshrl.u32 %v820, 7
        %v822 = vsub.s32 1, %v821
        %v823 = vrot.slane %v793, %v822
        %v824 = vlaneseq
        %v825 = vshrl.u32 %v824, 7
        %v826 = vsub.s32 1, %v825
        %v827 = vrot.slane %v797, %v826
        %v828 = vlaneseq
        %v829 = vshrl.u32 %v828, 7
        %v830 = vsub.s32 1, %v829
        %v831 = vrot.slane %v801, %v830
        %v832 = vlaneseq
        %v833 = vshrl.u32 %v832, 7
        %v834 = vsub.s32 1, %v833
        %v835 = vrot.slane %v805, %v834
        %v836 = vsel %vm644, %v815, %v770
        %v837 = vsel %vm645, %v819, %v771
        %v838 = vsel %vm646, %v815, %v772
        %v839 = vsel %vm647, %v819, %v773
        %v840 = vsel %vm648, %v823, %v774
        %v841 = vsel %vm649, %v827, %v775
        %v842 = vsel %vm650, %v823, %v776
        %v843 = vsel %vm651, %v827, %v777
        %v844 = vsel %vm652, %v831, %v778
        %v845 = vsel %vm653, %v835, %v779
        %v846 = vsel %vm654, %v831, %v780
        %v847 = vsel %vm655, %v835, %v781
        %v860 = vcombine.low %v836, %v837
        %v861 = vcombine.high %v836, %v837
        %v863 = vunpack.c.l.s4 1966171168
        %v864 = vunpack.c.0.s8 %v863
        %v865 = vlaneseq
        %v866 = vshrl.u32 %v865, 7
        %v867 = vsub.s32 %v864, %v866
        %v868 = vrot.slane %v860, %v867
        %v870 = vunpack.c.l.s4 1966171168
        %v871 = vunpack.c.0.s8 %v870
        %v872 = vlaneseq
        %v873 = vshrl.u32 %v872, 7
        %v874 = vsub.s32 %v871, %v873
        %v875 = vrot.slane %v861, %v874
        %v876 = vcombine.high %v868, %v868
        %v877 = vcombine.high %v875, %v875
        %v879 = vunpack.c.l.s4 1966171168
        %v880 = vunpack.c.0.s8 %v879
        %v881 = vlaneseq
        %v882 = vshrl.u32 %v881, 7
        %v883 = vsub.s32 %v880, %v882
        %v884 = vrot.slane %v868, %v883
        %v886 = vunpack.c.l.s4 1966171168
        %v887 = vunpack.c.0.s8 %v886
        %v888 = vlaneseq
        %v889 = vshrl.u32 %v888, 7
        %v890 = vsub.s32 %v887, %v889
        %v891 = vrot.slane %v875, %v890
        %v893 = vunpack.c.l.s4 1966171168
        %v894 = vunpack.c.0.s8 %v893
        %v895 = vlaneseq
        %v896 = vshrl.u32 %v895, 7
        %v897 = vsub.s32 %v894, %v896
        %v898 = vrot.slane %v876, %v897
        %v900 = vunpack.c.l.s4 1966171168
        %v901 = vunpack.c.0.s8 %v900
        %v902 = vlaneseq
        %v903 = vshrl.u32 %v902, 7
        %v904 = vsub.s32 %v901, %v903
        %v905 = vrot.slane %v877, %v904
        %v906 = vcombine.high %v884, %v884
        %v907 = vcombine.high %v891, %v891
        %v908 = vcombine.high %v898, %v898
        %v909 = vcombine.high %v905, %v905
        %v910 = vcombine.low %v838, %v839
        %v911 = vcombine.high %v838, %v839
        %v913 = vunpack.c.l.s4 1966171168
        %v914 = vunpack.c.0.s8 %v913
        %v915 = vlaneseq
        %v916 = vshrl.u32 %v915, 7
        %v917 = vsub.s32 %v914, %v916
        %v918 = vrot.slane %v910, %v917
        %v920 = vunpack.c.l.s4 1966171168
        %v921 = vunpack.c.0.s8 %v920
        %v922 = vlaneseq
        %v923 = vshrl.u32 %v922, 7
        %v924 = vsub.s32 %v921, %v923
        %v925 = vrot.slane %v911, %v924
        %v926 = vcombine.high %v918, %v918
        %v927 = vcombine.high %v925, %v925
        %v929 = vunpack.c.l.s4 1966171168
        %v930 = vunpack.c.0.s8 %v929
        %v931 = vlaneseq
        %v932 = vshrl.u32 %v931, 7
        %v933 = vsub.s32 %v930, %v932
        %v934 = vrot.slane %v918, %v933
        %v936 = vunpack.c.l.s4 1966171168
        %v937 = vunpack.c.0.s8 %v936
        %v938 = vlaneseq
        %v939 = vshrl.u32 %v938, 7
        %v940 = vsub.s32 %v937, %v939
        %v941 = vrot.slane %v925, %v940
        %v943 = vunpack.c.l.s4 1966171168
        %v944 = vunpack.c.0.s8 %v943
        %v945 = vlaneseq
        %v946 = vshrl.u32 %v945, 7
        %v947 = vsub.s32 %v944, %v946
        %v948 = vrot.slane %v926, %v947
        %v950 = vunpack.c.l.s4 1966171168
        %v951 = vunpack.c.0.s8 %v950
        %v952 = vlaneseq
        %v953 = vshrl.u32 %v952, 7
        %v954 = vsub.s32 %v951, %v953
        %v955 = vrot.slane %v927, %v954
        %v956 = vcombine.high %v934, %v934
        %v957 = vcombine.high %v941, %v941
        %v958 = vcombine.high %v948, %v948
        %v959 = vcombine.high %v955, %v955
        %v960 = vcombine.low %v840, %v841
        %v961 = vcombine.high %v840, %v841
        %v963 = vunpack.c.l.s4 1966171168
        %v964 = vunpack.c.0.s8 %v963
        %v965 = vlaneseq
        %v966 = vshrl.u32 %v965, 7
        %v967 = vsub.s32 %v964, %v966
        %v968 = vrot.slane %v960, %v967
        %v970 = vunpack.c.l.s4 1966171168
        %v971 = vunpack.c.0.s8 %v970
        %v972 = vlaneseq
        %v973 = vshrl.u32 %v972, 7
        %v974 = vsub.s32 %v971, %v973
        %v975 = vrot.slane %v961, %v974
        %v976 = vcombine.high %v968, %v968
        %v977 = vcombine.high %v975, %v975
        %v979 = vunpack.c.l.s4 1966171168
        %v980 = vunpack.c.0.s8 %v979
        %v981 = vlaneseq
        %v982 = vshrl.u32 %v981, 7
        %v983 = vsub.s32 %v980, %v982
        %v984 = vrot.slane %v968, %v983
        %v986 = vunpack.c.l.s4 1966171168
        %v987 = vunpack.c.0.s8 %v986
        %v988 = vlaneseq
        %v989 = vshrl.u32 %v988, 7
        %v990 = vsub.s32 %v987, %v989
        %v991 = vrot.slane %v975, %v990
        %v993 = vunpack.c.l.s4 1966171168
        %v994 = vunpack.c.0.s8 %v993
        %v995 = vlaneseq
        %v996 = vshrl.u32 %v995, 7
        %v997 = vsub.s32 %v994, %v996
        %v998 = vrot.slane %v976, %v997
        %v1000 = vunpack.c.l.s4 1966171168
        %v1001 = vunpack.c.0.s8 %v1000
        %v1002 = vlaneseq
        %v1003 = vshrl.u32 %v1002, 7
        %v1004 = vsub.s32 %v1001, %v1003
        %v1005 = vrot.slane %v977, %v1004
        %v1006 = vcombine.high %v984, %v984
        %v1007 = vcombine.high %v991, %v991
        %v1008 = vcombine.high %v998, %v998
        %v1009 = vcombine.high %v1005, %v1005
        %v1010 = vcombine.low %v842, %v843
        %v1011 = vcombine.high %v842, %v843
        %v1013 = vunpack.c.l.s4 1966171168
        %v1014 = vunpack.c.0.s8 %v1013
        %v1015 = vlaneseq
        %v1016 = vshrl.u32 %v1015, 7
        %v1017 = vsub.s32 %v1014, %v1016
        %v1018 = vrot.slane %v1010, %v1017
        %v1020 = vunpack.c.l.s4 1966171168
        %v1021 = vunpack.c.0.s8 %v1020
        %v1022 = vlaneseq
        %v1023 = vshrl.u32 %v1022, 7
        %v1024 = vsub.s32 %v1021, %v1023
        %v1025 = vrot.slane %v1011, %v1024
        %v1026 = vcombine.high %v1018, %v1018
        %v1027 = vcombine.high %v1025, %v1025
        %v1029 = vunpack.c.l.s4 1966171168
        %v1030 = vunpack.c.0.s8 %v1029
        %v1031 = vlaneseq
        %v1032 = vshrl.u32 %v1031, 7
        %v1033 = vsub.s32 %v1030, %v1032
        %v1034 = vrot.slane %v1018, %v1033
        %v1036 = vunpack.c.l.s4 1966171168
        %v1037 = vunpack.c.0.s8 %v1036
        %v1038 = vlaneseq
        %v1039 = vshrl.u32 %v1038, 7
        %v1040 = vsub.s32 %v1037, %v1039
        %v1041 = vrot.slane %v1025, %v1040
        %v1043 = vunpack.c.l.s4 1966171168
        %v1044 = vunpack.c.0.s8 %v1043
        %v1045 = vlaneseq
        %v1046 = vshrl.u32 %v1045, 7
        %v1047 = vsub.s32 %v1044, %v1046
        %v1048 = vrot.slane %v1026, %v1047
        %v1050 = vunpack.c.l.s4 1966171168
        %v1051 = vunpack.c.0.s8 %v1050
        %v1052 = vlaneseq
        %v1053 = vshrl.u32 %v1052, 7
        %v1054 = vsub.s32 %v1051, %v1053
        %v1055 = vrot.slane %v1027, %v1054
        %v1056 = vcombine.high %v1034, %v1034
        %v1057 = vcombine.high %v1041, %v1041
        %v1058 = vcombine.high %v1048, %v1048
        %v1059 = vcombine.high %v1055, %v1055
        %v1060 = vcombine.low %v844, %v845
        %v1061 = vcombine.high %v844, %v845
        %v1063 = vunpack.c.l.s4 1966171168
        %v1064 = vunpack.c.0.s8 %v1063
        %v1065 = vlaneseq
        %v1066 = vshrl.u32 %v1065, 7
        %v1067 = vsub.s32 %v1064, %v1066
        %v1068 = vrot.slane %v1060, %v1067
        %v1070 = vunpack.c.l.s4 1966171168
        %v1071 = vunpack.c.0.s8 %v1070
        %v1072 = vlaneseq
        %v1073 = vshrl.u32 %v1072, 7
        %v1074 = vsub.s32 %v1071, %v1073
        %v1075 = vrot.slane %v1061, %v1074
        %v1076 = vcombine.high %v1068, %v1068
        %v1077 = vcombine.high %v1075, %v1075
        %v1079 = vunpack.c.l.s4 1966171168
        %v1080 = vunpack.c.0.s8 %v1079
        %v1081 = vlaneseq
        %v1082 = vshrl.u32 %v1081, 7
        %v1083 = vsub.s32 %v1080, %v1082
        %v1084 = vrot.slane %v1068, %v1083
        %v1086 = vunpack.c.l.s4 1966171168
        %v1087 = vunpack.c.0.s8 %v1086
        %v1088 = vlaneseq
        %v1089 = vshrl.u32 %v1088, 7
        %v1090 = vsub.s32 %v1087, %v1089
        %v1091 = vrot.slane %v1075, %v1090
        %v1093 = vunpack.c.l.s4 1966171168
        %v1094 = vunpack.c.0.s8 %v1093
        %v1095 = vlaneseq
        %v1096 = vshrl.u32 %v1095, 7
        %v1097 = vsub.s32 %v1094, %v1096
        %v1098 = vrot.slane %v1076, %v1097
        %v1100 = vunpack.c.l.s4 1966171168
        %v1101 = vunpack.c.0.s8 %v1100
        %v1102 = vlaneseq
        %v1103 = vshrl.u32 %v1102, 7
        %v1104 = vsub.s32 %v1101, %v1103
        %v1105 = vrot.slane %v1077, %v1104
        %v1106 = vcombine.high %v1084, %v1084
        %v1107 = vcombine.high %v1091, %v1091
        %v1108 = vcombine.high %v1098, %v1098
        %v1109 = vcombine.high %v1105, %v1105
        %v1110 = vcombine.low %v846, %v847
        %v1111 = vcombine.high %v846, %v847
        %v1113 = vunpack.c.l.s4 1966171168
        %v1114 = vunpack.c.0.s8 %v1113
        %v1115 = vlaneseq
        %v1116 = vshrl.u32 %v1115, 7
        %v1117 = vsub.s32 %v1114, %v1116
        %v1118 = vrot.slane %v1110, %v1117
        %v1120 = vunpack.c.l.s4 1966171168
        %v1121 = vunpack.c.0.s8 %v1120
        %v1122 = vlaneseq
        %v1123 = vshrl.u32 %v1122, 7
        %v1124 = vsub.s32 %v1121, %v1123
        %v1125 = vrot.slane %v1111, %v1124
        %v1126 = vcombine.high %v1118, %v1118
        %v1127 = vcombine.high %v1125, %v1125
        %v1129 = vunpack.c.l.s4 1966171168
        %v1130 = vunpack.c.0.s8 %v1129
        %v1131 = vlaneseq
        %v1132 = vshrl.u32 %v1131, 7
        %v1133 = vsub.s32 %v1130, %v1132
        %v1134 = vrot.slane %v1118, %v1133
        %v1136 = vunpack.c.l.s4 1966171168
        %v1137 = vunpack.c.0.s8 %v1136
        %v1138 = vlaneseq
        %v1139 = vshrl.u32 %v1138, 7
        %v1140 = vsub.s32 %v1137, %v1139
        %v1141 = vrot.slane %v1125, %v1140
        %v1143 = vunpack.c.l.s4 1966171168
        %v1144 = vunpack.c.0.s8 %v1143
        %v1145 = vlaneseq
        %v1146 = vshrl.u32 %v1145, 7
        %v1147 = vsub.s32 %v1144, %v1146
        %v1148 = vrot.slane %v1126, %v1147
        %v1150 = vunpack.c.l.s4 1966171168
        %v1151 = vunpack.c.0.s8 %v1150
        %v1152 = vlaneseq
        %v1153 = vshrl.u32 %v1152, 7
        %v1154 = vsub.s32 %v1151, %v1153
        %v1155 = vrot.slane %v1127, %v1154
        %v1156 = vcombine.high %v1134, %v1134
        %v1157 = vcombine.high %v1141, %v1141
        %v1158 = vcombine.high %v1148, %v1148
        %v1159 = vcombine.high %v1155, %v1155
        %v1160 = vlaneseq
        %v1161 = vshrl.u32 %v1160, 7
        %v1162 = vsub.s32 0, %v1161
        %v1163 = vrot.slane %v884, %v1162
        %v1164 = vlaneseq
        %v1165 = vshrl.u32 %v1164, 7
        %v1166 = vsub.s32 1, %v1165
        %v1167 = vrot.slane %v884, %v1166
        %v1168 = vlaneseq
        %v1169 = vshrl.u32 %v1168, 7
        %v1170 = vsub.s32 0, %v1169
        %v1171 = vrot.slane %v898, %v1170
        %v1172 = vlaneseq
        %v1173 = vshrl.u32 %v1172, 7
        %v1174 = vsub.s32 1, %v1173
        %v1175 = vrot.slane %v898, %v1174
        %v1176 = vlaneseq
        %v1177 = vshrl.u32 %v1176, 7
        %v1178 = vsub.s32 0, %v1177
        %v1179 = vrot.slane %v906, %v1178
        %v1180 = vlaneseq
        %v1181 = vshrl.u32 %v1180, 7
        %v1182 = vsub.s32 1, %v1181
        %v1183 = vrot.slane %v906, %v1182
        %v1184 = vlaneseq
        %v1185 = vshrl.u32 %v1184, 7
        %v1186 = vsub.s32 0, %v1185
        %v1187 = vrot.slane %v908, %v1186
        %v1188 = vlaneseq
        %v1189 = vshrl.u32 %v1188, 7
        %v1190 = vsub.s32 1, %v1189
        %v1191 = vrot.slane %v908, %v1190
        %v1192 = vlaneseq
        %v1193 = vshrl.u32 %v1192, 7
        %v1194 = vsub.s32 0, %v1193
        %v1195 = vrot.slane %v891, %v1194
        %v1196 = vlaneseq
        %v1197 = vshrl.u32 %v1196, 7
        %v1198 = vsub.s32 1, %v1197
        %v1199 = vrot.slane %v891, %v1198
        %v1200 = vlaneseq
        %v1201 = vshrl.u32 %v1200, 7
        %v1202 = vsub.s32 0, %v1201
        %v1203 = vrot.slane %v905, %v1202
        %v1204 = vlaneseq
        %v1205 = vshrl.u32 %v1204, 7
        %v1206 = vsub.s32 1, %v1205
        %v1207 = vrot.slane %v905, %v1206
        %v1208 = vlaneseq
        %v1209 = vshrl.u32 %v1208, 7
        %v1210 = vsub.s32 0, %v1209
        %v1211 = vrot.slane %v907, %v1210
        %v1212 = vlaneseq
        %v1213 = vshrl.u32 %v1212, 7
        %v1214 = vsub.s32 1, %v1213
        %v1215 = vrot.slane %v907, %v1214
        %v1216 = vlaneseq
        %v1217 = vshrl.u32 %v1216, 7
        %v1218 = vsub.s32 0, %v1217
        %v1219 = vrot.slane %v909, %v1218
        %v1220 = vlaneseq
        %v1221 = vshrl.u32 %v1220, 7
        %v1222 = vsub.s32 1, %v1221
        %v1223 = vrot.slane %v909, %v1222
        %v1224 = vlaneseq
        %v1225 = vshrl.u32 %v1224, 7
        %v1226 = vsub.s32 0, %v1225
        %v1227 = vrot.slane %v934, %v1226
        %v1228 = vlaneseq
        %v1229 = vshrl.u32 %v1228, 7
        %v1230 = vsub.s32 1, %v1229
        %v1231 = vrot.slane %v934, %v1230
        %v1232 = vlaneseq
        %v1233 = vshrl.u32 %v1232, 7
        %v1234 = vsub.s32 0, %v1233
        %v1235 = vrot.slane %v948, %v1234
        %v1236 = vlaneseq
        %v1237 = vshrl.u32 %v1236, 7
        %v1238 = vsub.s32 1, %v1237
        %v1239 = vrot.slane %v948, %v1238
        %v1240 = vlaneseq
        %v1241 = vshrl.u32 %v1240, 7
        %v1242 = vsub.s32 0, %v1241
        %v1243 = vrot.slane %v956, %v1242
        %v1244 = vlaneseq
        %v1245 = vshrl.u32 %v1244, 7
        %v1246 = vsub.s32 1, %v1245
        %v1247 = vrot.slane %v956, %v1246
        %v1248 = vlaneseq
        %v1249 = vshrl.u32 %v1248, 7
        %v1250 = vsub.s32 0, %v1249
        %v1251 = vrot.slane %v958, %v1250
        %v1252 = vlaneseq
        %v1253 = vshrl.u32 %v1252, 7
        %v1254 = vsub.s32 1, %v1253
        %v1255 = vrot.slane %v958, %v1254
        %v1256 = vlaneseq
        %v1257 = vshrl.u32 %v1256, 7
        %v1258 = vsub.s32 0, %v1257
        %v1259 = vrot.slane %v941, %v1258
        %v1260 = vlaneseq
        %v1261 = vshrl.u32 %v1260, 7
        %v1262 = vsub.s32 1, %v1261
        %v1263 = vrot.slane %v941, %v1262
        %v1264 = vlaneseq
        %v1265 = vshrl.u32 %v1264, 7
        %v1266 = vsub.s32 0, %v1265
        %v1267 = vrot.slane %v955, %v1266
        %v1268 = vlaneseq
        %v1269 = vshrl.u32 %v1268, 7
        %v1270 = vsub.s32 1, %v1269
        %v1271 = vrot.slane %v955, %v1270
        %v1272 = vlaneseq
        %v1273 = vshrl.u32 %v1272, 7
        %v1274 = vsub.s32 0, %v1273
        %v1275 = vrot.slane %v957, %v1274
        %v1276 = vlaneseq
        %v1277 = vshrl.u32 %v1276, 7
        %v1278 = vsub.s32 1, %v1277
        %v1279 = vrot.slane %v957, %v1278
        %v1280 = vlaneseq
        %v1281 = vshrl.u32 %v1280, 7
        %v1282 = vsub.s32 0, %v1281
        %v1283 = vrot.slane %v959, %v1282
        %v1284 = vlaneseq
        %v1285 = vshrl.u32 %v1284, 7
        %v1286 = vsub.s32 1, %v1285
        %v1287 = vrot.slane %v959, %v1286
        %v1288 = vlaneseq
        %v1289 = vshrl.u32 %v1288, 7
        %v1290 = vsub.s32 0, %v1289
        %v1291 = vrot.slane %v984, %v1290
        %v1292 = vlaneseq
        %v1293 = vshrl.u32 %v1292, 7
        %v1294 = vsub.s32 1, %v1293
        %v1295 = vrot.slane %v984, %v1294
        %v1296 = vlaneseq
        %v1297 = vshrl.u32 %v1296, 7
        %v1298 = vsub.s32 0, %v1297
        %v1299 = vrot.slane %v998, %v1298
        %v1300 = vlaneseq
        %v1301 = vshrl.u32 %v1300, 7
        %v1302 = vsub.s32 1, %v1301
        %v1303 = vrot.slane %v998, %v1302
        %v1304 = vlaneseq
        %v1305 = vshrl.u32 %v1304, 7
        %v1306 = vsub.s32 0, %v1305
        %v1307 = vrot.slane %v1006, %v1306
        %v1308 = vlaneseq
        %v1309 = vshrl.u32 %v1308, 7
        %v1310 = vsub.s32 1, %v1309
        %v1311 = vrot.slane %v1006, %v1310
        %v1312 = vlaneseq
        %v1313 = vshrl.u32 %v1312, 7
        %v1314 = vsub.s32 0, %v1313
        %v1315 = vrot.slane %v1008, %v1314
        %v1316 = vlaneseq
        %v1317 = vshrl.u32 %v1316, 7
        %v1318 = vsub.s32 1, %v1317
        %v1319 = vrot.slane %v1008, %v1318
        %v1320 = vlaneseq
        %v1321 = vshrl.u32 %v1320, 7
        %v1322 = vsub.s32 0, %v1321
        %v1323 = vrot.slane %v991, %v1322
        %v1324 = vlaneseq
        %v1325 = vshrl.u32 %v1324, 7
        %v1326 = vsub.s32 1, %v1325
        %v1327 = vrot.slane %v991, %v1326
        %v1328 = vlaneseq
        %v1329 = vshrl.u32 %v1328, 7
        %v1330 = vsub.s32 0, %v1329
        %v1331 = vrot.slane %v1005, %v1330
        %v1332 = vlaneseq
        %v1333 = vshrl.u32 %v1332, 7
        %v1334 = vsub.s32 1, %v1333
        %v1335 = vrot.slane %v1005, %v1334
        %v1336 = vlaneseq
        %v1337 = vshrl.u32 %v1336, 7
        %v1338 = vsub.s32 0, %v1337
        %v1339 = vrot.slane %v1007, %v1338
        %v1340 = vlaneseq
        %v1341 = vshrl.u32 %v1340, 7
        %v1342 = vsub.s32 1, %v1341
        %v1343 = vrot.slane %v1007, %v1342
        %v1344 = vlaneseq
        %v1345 = vshrl.u32 %v1344, 7
        %v1346 = vsub.s32 0, %v1345
        %v1347 = vrot.slane %v1009, %v1346
        %v1348 = vlaneseq
        %v1349 = vshrl.u32 %v1348, 7
        %v1350 = vsub.s32 1, %v1349
        %v1351 = vrot.slane %v1009, %v1350
        %v1352 = vlaneseq
        %v1353 = vshrl.u32 %v1352, 7
        %v1354 = vsub.s32 0, %v1353
        %v1355 = vrot.slane %v1034, %v1354
        %v1356 = vlaneseq
        %v1357 = vshrl.u32 %v1356, 7
        %v1358 = vsub.s32 1, %v1357
        %v1359 = vrot.slane %v1034, %v1358
        %v1360 = vlaneseq
        %v1361 = vshrl.u32 %v1360, 7
        %v1362 = vsub.s32 0, %v1361
        %v1363 = vrot.slane %v1048, %v1362
        %v1364 = vlaneseq
        %v1365 = vshrl.u32 %v1364, 7
        %v1366 = vsub.s32 1, %v1365
        %v1367 = vrot.slane %v1048, %v1366
        %v1368 = vlaneseq
        %v1369 = vshrl.u32 %v1368, 7
        %v1370 = vsub.s32 0, %v1369
        %v1371 = vrot.slane %v1056, %v1370
        %v1372 = vlaneseq
        %v1373 = vshrl.u32 %v1372, 7
        %v1374 = vsub.s32 1, %v1373
        %v1375 = vrot.slane %v1056, %v1374
        %v1376 = vlaneseq
        %v1377 = vshrl.u32 %v1376, 7
        %v1378 = vsub.s32 0, %v1377
        %v1379 = vrot.slane %v1058, %v1378
        %v1380 = vlaneseq
        %v1381 = vshrl.u32 %v1380, 7
        %v1382 = vsub.s32 1, %v1381
        %v1383 = vrot.slane %v1058, %v1382
        %v1384 = vlaneseq
        %v1385 = vshrl.u32 %v1384, 7
        %v1386 = vsub.s32 0, %v1385
        %v1387 = vrot.slane %v1041, %v1386
        %v1388 = vlaneseq
        %v1389 = vshrl.u32 %v1388, 7
        %v1390 = vsub.s32 1, %v1389
        %v1391 = vrot.slane %v1041, %v1390
        %v1392 = vlaneseq
        %v1393 = vshrl.u32 %v1392, 7
        %v1394 = vsub.s32 0, %v1393
        %v1395 = vrot.slane %v1055, %v1394
        %v1396 = vlaneseq
        %v1397 = vshrl.u32 %v1396, 7
        %v1398 = vsub.s32 1, %v1397
        %v1399 = vrot.slane %v1055, %v1398
        %v1400 = vlaneseq
        %v1401 = vshrl.u32 %v1400, 7
        %v1402 = vsub.s32 0, %v1401
        %v1403 = vrot.slane %v1057, %v1402
        %v1404 = vlaneseq
        %v1405 = vshrl.u32 %v1404, 7
        %v1406 = vsub.s32 1, %v1405
        %v1407 = vrot.slane %v1057, %v1406
        %v1408 = vlaneseq
        %v1409 = vshrl.u32 %v1408, 7
        %v1410 = vsub.s32 0, %v1409
        %v1411 = vrot.slane %v1059, %v1410
        %v1412 = vlaneseq
        %v1413 = vshrl.u32 %v1412, 7
        %v1414 = vsub.s32 1, %v1413
        %v1415 = vrot.slane %v1059, %v1414
        %v1416 = vlaneseq
        %v1417 = vshrl.u32 %v1416, 7
        %v1418 = vsub.s32 0, %v1417
        %v1419 = vrot.slane %v1084, %v1418
        %v1420 = vlaneseq
        %v1421 = vshrl.u32 %v1420, 7
        %v1422 = vsub.s32 1, %v1421
        %v1423 = vrot.slane %v1084, %v1422
        %v1424 = vlaneseq
        %v1425 = vshrl.u32 %v1424, 7
        %v1426 = vsub.s32 0, %v1425
        %v1427 = vrot.slane %v1098, %v1426
        %v1428 = vlaneseq
        %v1429 = vshrl.u32 %v1428, 7
        %v1430 = vsub.s32 1, %v1429
        %v1431 = vrot.slane %v1098, %v1430
        %v1432 = vlaneseq
        %v1433 = vshrl.u32 %v1432, 7
        %v1434 = vsub.s32 0, %v1433
        %v1435 = vrot.slane %v1106, %v1434
        %v1436 = vlaneseq
        %v1437 = vshrl.u32 %v1436, 7
        %v1438 = vsub.s32 1, %v1437
        %v1439 = vrot.slane %v1106, %v1438
        %v1440 = vlaneseq
        %v1441 = vshrl.u32 %v1440, 7
        %v1442 = vsub.s32 0, %v1441
        %v1443 = vrot.slane %v1108, %v1442
        %v1444 = vlaneseq
        %v1445 = vshrl.u32 %v1444, 7
        %v1446 = vsub.s32 1, %v1445
        %v1447 = vrot.slane %v1108, %v1446
        %v1448 = vlaneseq
        %v1449 = vshrl.u32 %v1448, 7
        %v1450 = vsub.s32 0, %v1449
        %v1451 = vrot.slane %v1091, %v1450
        %v1452 = vlaneseq
        %v1453 = vshrl.u32 %v1452, 7
        %v1454 = vsub.s32 1, %v1453
        %v1455 = vrot.slane %v1091, %v1454
        %v1456 = vlaneseq
        %v1457 = vshrl.u32 %v1456, 7
        %v1458 = vsub.s32 0, %v1457
        %v1459 = vrot.slane %v1105, %v1458
        %v1460 = vlaneseq
        %v1461 = vshrl.u32 %v1460, 7
        %v1462 = vsub.s32 1, %v1461
        %v1463 = vrot.slane %v1105, %v1462
        %v1464 = vlaneseq
        %v1465 = vshrl.u32 %v1464, 7
        %v1466 = vsub.s32 0, %v1465
        %v1467 = vrot.slane %v1107, %v1466
        %v1468 = vlaneseq
        %v1469 = vshrl.u32 %v1468, 7
        %v1470 = vsub.s32 1, %v1469
        %v1471 = vrot.slane %v1107, %v1470
        %v1472 = vlaneseq
        %v1473 = vshrl.u32 %v1472, 7
        %v1474 = vsub.s32 0, %v1473
        %v1475 = vrot.slane %v1109, %v1474
        %v1476 = vlaneseq
        %v1477 = vshrl.u32 %v1476, 7
        %v1478 = vsub.s32 1, %v1477
        %v1479 = vrot.slane %v1109, %v1478
        %v1480 = vlaneseq
        %v1481 = vshrl.u32 %v1480, 7
        %v1482 = vsub.s32 0, %v1481
        %v1483 = vrot.slane %v1134, %v1482
        %v1484 = vlaneseq
        %v1485 = vshrl.u32 %v1484, 7
        %v1486 = vsub.s32 1, %v1485
        %v1487 = vrot.slane %v1134, %v1486
        %v1488 = vlaneseq
        %v1489 = vshrl.u32 %v1488, 7
        %v1490 = vsub.s32 0, %v1489
        %v1491 = vrot.slane %v1148, %v1490
        %v1492 = vlaneseq
        %v1493 = vshrl.u32 %v1492, 7
        %v1494 = vsub.s32 1, %v1493
        %v1495 = vrot.slane %v1148, %v1494
        %v1496 = vlaneseq
        %v1497 = vshrl.u32 %v1496, 7
        %v1498 = vsub.s32 0, %v1497
        %v1499 = vrot.slane %v1156, %v1498
        %v1500 = vlaneseq
        %v1501 = vshrl.u32 %v1500, 7
        %v1502 = vsub.s32 1, %v1501
        %v1503 = vrot.slane %v1156, %v1502
        %v1504 = vlaneseq
        %v1505 = vshrl.u32 %v1504, 7
        %v1506 = vsub.s32 0, %v1505
        %v1507 = vrot.slane %v1158, %v1506
        %v1508 = vlaneseq
        %v1509 = vshrl.u32 %v1508, 7
        %v1510 = vsub.s32 1, %v1509
        %v1511 = vrot.slane %v1158, %v1510
        %v1512 = vlaneseq
        %v1513 = vshrl.u32 %v1512, 7
        %v1514 = vsub.s32 0, %v1513
        %v1515 = vrot.slane %v1141, %v1514
        %v1516 = vlaneseq
        %v1517 = vshrl.u32 %v1516, 7
        %v1518 = vsub.s32 1, %v1517
        %v1519 = vrot.slane %v1141, %v1518
        %v1520 = vlaneseq
        %v1521 = vshrl.u32 %v1520, 7
        %v1522 = vsub.s32 0, %v1521
        %v1523 = vrot.slane %v1155, %v1522
        %v1524 = vlaneseq
        %v1525 = vshrl.u32 %v1524, 7
        %v1526 = vsub.s32 1, %v1525
        %v1527 = vrot.slane %v1155, %v1526
        %v1528 = vlaneseq
        %v1529 = vshrl.u32 %v1528, 7
        %v1530 = vsub.s32 0, %v1529
        %v1531 = vrot.slane %v1157, %v1530
        %v1532 = vlaneseq
        %v1533 = vshrl.u32 %v1532, 7
        %v1534 = vsub.s32 1, %v1533
        %v1535 = vrot.slane %v1157, %v1534
        %v1536 = vlaneseq
        %v1537 = vshrl.u32 %v1536, 7
        %v1538 = vsub.s32 0, %v1537
        %v1539 = vrot.slane %v1159, %v1538
        %v1540 = vlaneseq
        %v1541 = vshrl.u32 %v1540, 7
        %v1542 = vsub.s32 1, %v1541
        %v1543 = vrot.slane %v1159, %v1542
        %v1640 = vmul.f32 %v1163, %v584
        %v1641 = vmul.f32 %v1167, %v585
        %v1642 = vmul.f32 %v1163, %v586
        %v1643 = vmul.f32 %v1167, %v587
        %v1644 = vmul.f32 %v1171, %v584
        %v1645 = vmul.f32 %v1175, %v585
        %v1646 = vmul.f32 %v1171, %v586
        %v1647 = vmul.f32 %v1175, %v587
        %v1648 = vmul.f32 %v1179, %v584
        %v1649 = vmul.f32 %v1183, %v585
        %v1650 = vmul.f32 %v1179, %v586
        %v1651 = vmul.f32 %v1183, %v587
        %v1652 = vmul.f32 %v1187, %v584
        %v1653 = vmul.f32 %v1191, %v585
        %v1654 = vmul.f32 %v1187, %v586
        %v1655 = vmul.f32 %v1191, %v587
        %v1656 = vmul.f32 %v1195, %v584
        %v1657 = vmul.f32 %v1199, %v585
        %v1658 = vmul.f32 %v1195, %v586
        %v1659 = vmul.f32 %v1199, %v587
        %v1660 = vmul.f32 %v1203, %v584
        %v1661 = vmul.f32 %v1207, %v585
        %v1662 = vmul.f32 %v1203, %v586
        %v1663 = vmul.f32 %v1207, %v587
        %v1664 = vmul.f32 %v1211, %v584
        %v1665 = vmul.f32 %v1215, %v585
        %v1666 = vmul.f32 %v1211, %v586
        %v1667 = vmul.f32 %v1215, %v587
        %v1668 = vmul.f32 %v1219, %v584
        %v1669 = vmul.f32 %v1223, %v585
        %v1670 = vmul.f32 %v1219, %v586
        %v1671 = vmul.f32 %v1223, %v587
        %v1672 = vmul.f32 %v1227, %v584
        %v1673 = vmul.f32 %v1231, %v585
        %v1674 = vmul.f32 %v1227, %v586
        %v1675 = vmul.f32 %v1231, %v587
        %v1676 = vmul.f32 %v1235, %v584
        %v1677 = vmul.f32 %v1239, %v585
        %v1678 = vmul.f32 %v1235, %v586
        %v1679 = vmul.f32 %v1239, %v587
        %v1680 = vmul.f32 %v1243, %v584
        %v1681 = vmul.f32 %v1247, %v585
        %v1682 = vmul.f32 %v1243, %v586
        %v1683 = vmul.f32 %v1247, %v587
        %v1684 = vmul.f32 %v1251, %v584
        %v1685 = vmul.f32 %v1255, %v585
        %v1686 = vmul.f32 %v1251, %v586
        %v1687 = vmul.f32 %v1255, %v587
        %v1688 = vmul.f32 %v1259, %v584
        %v1689 = vmul.f32 %v1263, %v585
        %v1690 = vmul.f32 %v1259, %v586
        %v1691 = vmul.f32 %v1263, %v587
        %v1692 = vmul.f32 %v1267, %v584
        %v1693 = vmul.f32 %v1271, %v585
        %v1694 = vmul.f32 %v1267, %v586
        %v1695 = vmul.f32 %v1271, %v587
        %v1696 = vmul.f32 %v1275, %v584
        %v1697 = vmul.f32 %v1279, %v585
        %v1698 = vmul.f32 %v1275, %v586
        %v1699 = vmul.f32 %v1279, %v587
        %v1700 = vmul.f32 %v1283, %v584
        %v1701 = vmul.f32 %v1287, %v585
        %v1702 = vmul.f32 %v1283, %v586
        %v1703 = vmul.f32 %v1287, %v587
        %v1704 = vmul.f32 %v1291, %v588
        %v1705 = vmul.f32 %v1295, %v589
        %v1706 = vmul.f32 %v1291, %v590
        %v1707 = vmul.f32 %v1295, %v591
        %v1708 = vmul.f32 %v1299, %v588
        %v1709 = vmul.f32 %v1303, %v589
        %v1710 = vmul.f32 %v1299, %v590
        %v1711 = vmul.f32 %v1303, %v591
        %v1712 = vmul.f32 %v1307, %v588
        %v1713 = vmul.f32 %v1311, %v589
        %v1714 = vmul.f32 %v1307, %v590
        %v1715 = vmul.f32 %v1311, %v591
        %v1716 = vmul.f32 %v1315, %v588
        %v1717 = vmul.f32 %v1319, %v589
        %v1718 = vmul.f32 %v1315, %v590
        %v1719 = vmul.f32 %v1319, %v591
        %v1720 = vmul.f32 %v1323, %v588
        %v1721 = vmul.f32 %v1327, %v589
        %v1722 = vmul.f32 %v1323, %v590
        %v1723 = vmul.f32 %v1327, %v591
        %v1724 = vmul.f32 %v1331, %v588
        %v1725 = vmul.f32 %v1335, %v589
        %v1726 = vmul.f32 %v1331, %v590
        %v1727 = vmul.f32 %v1335, %v591
        %v1728 = vmul.f32 %v1339, %v588
        %v1729 = vmul.f32 %v1343, %v589
        %v1730 = vmul.f32 %v1339, %v590
        %v1731 = vmul.f32 %v1343, %v591
        %v1732 = vmul.f32 %v1347, %v588
        %v1733 = vmul.f32 %v1351, %v589
        %v1734 = vmul.f32 %v1347, %v590
        %v1735 = vmul.f32 %v1351, %v591
        %v1736 = vmul.f32 %v1355, %v588
        %v1737 = vmul.f32 %v1359, %v589
        %v1738 = vmul.f32 %v1355, %v590
        %v1739 = vmul.f32 %v1359, %v591
        %v1740 = vmul.f32 %v1363, %v588
        %v1741 = vmul.f32 %v1367, %v589
        %v1742 = vmul.f32 %v1363, %v590
        %v1743 = vmul.f32 %v1367, %v591
        %v1744 = vmul.f32 %v1371, %v588
        %v1745 = vmul.f32 %v1375, %v589
        %v1746 = vmul.f32 %v1371, %v590
        %v1747 = vmul.f32 %v1375, %v591
        %v1748 = vmul.f32 %v1379, %v588
        %v1749 = vmul.f32 %v1383, %v589
        %v1750 = vmul.f32 %v1379, %v590
        %v1751 = vmul.f32 %v1383, %v591
        %v1752 = vmul.f32 %v1387, %v588
        %v1753 = vmul.f32 %v1391, %v589
        %v1754 = vmul.f32 %v1387, %v590
        %v1755 = vmul.f32 %v1391, %v591
        %v1756 = vmul.f32 %v1395, %v588
        %v1757 = vmul.f32 %v1399, %v589
        %v1758 = vmul.f32 %v1395, %v590
        %v1759 = vmul.f32 %v1399, %v591
        %v1760 = vmul.f32 %v1403, %v588
        %v1761 = vmul.f32 %v1407, %v589
        %v1762 = vmul.f32 %v1403, %v590
        %v1763 = vmul.f32 %v1407, %v591
        %v1764 = vmul.f32 %v1411, %v588
        %v1765 = vmul.f32 %v1415, %v589
        %v1766 = vmul.f32 %v1411, %v590
        %v1767 = vmul.f32 %v1415, %v591
        %v1768 = vmul.f32 %v1419, %v592
        %v1769 = vmul.f32 %v1423, %v593
        %v1770 = vmul.f32 %v1419, %v594
        %v1771 = vmul.f32 %v1423, %v595
        %v1772 = vmul.f32 %v1427, %v592
        %v1773 = vmul.f32 %v1431, %v593
        %v1774 = vmul.f32 %v1427, %v594
        %v1775 = vmul.f32 %v1431, %v595
        %v1776 = vmul.f32 %v1435, %v592
        %v1777 = vmul.f32 %v1439, %v593
        %v1778 = vmul.f32 %v1435, %v594
        %v1779 = vmul.f32 %v1439, %v595
        %v1780 = vmul.f32 %v1443, %v592
        %v1781 = vmul.f32 %v1447, %v593
        %v1782 = vmul.f32 %v1443, %v594
        %v1783 = vmul.f32 %v1447, %v595
        %v1784 = vmul.f32 %v1451, %v592
        %v1785 = vmul.f32 %v1455, %v593
        %v1786 = vmul.f32 %v1451, %v594
        %v1787 = vmul.f32 %v1455, %v595
        %v1788 = vmul.f32 %v1459, %v592
        %v1789 = vmul.f32 %v1463, %v593
        %v1790 = vmul.f32 %v1459, %v594
        %v1791 = vmul.f32 %v1463, %v595
        %v1792 = vmul.f32 %v1467, %v592
        %v1793 = vmul.f32 %v1471, %v593
        %v1794 = vmul.f32 %v1467, %v594
        %v1795 = vmul.f32 %v1471, %v595
        %v1796 = vmul.f32 %v1475, %v592
        %v1797 = vmul.f32 %v1479, %v593
        %v1798 = vmul.f32 %v1475, %v594
        %v1799 = vmul.f32 %v1479, %v595
        %v1800 = vmul.f32 %v1483, %v592
        %v1801 = vmul.f32 %v1487, %v593
        %v1802 = vmul.f32 %v1483, %v594
        %v1803 = vmul.f32 %v1487, %v595
        %v1804 = vmul.f32 %v1491, %v592
        %v1805 = vmul.f32 %v1495, %v593
        %v1806 = vmul.f32 %v1491, %v594
        %v1807 = vmul.f32 %v1495, %v595
        %v1808 = vmul.f32 %v1499, %v592
        %v1809 = vmul.f32 %v1503, %v593
        %v1810 = vmul.f32 %v1499, %v594
        %v1811 = vmul.f32 %v1503, %v595
        %v1812 = vmul.f32 %v1507, %v592
        %v1813 = vmul.f32 %v1511, %v593
        %v1814 = vmul.f32 %v1507, %v594
        %v1815 = vmul.f32 %v1511, %v595
        %v1816 = vmul.f32 %v1515, %v592
        %v1817 = vmul.f32 %v1519, %v593
        %v1818 = vmul.f32 %v1515, %v594
        %v1819 = vmul.f32 %v1519, %v595
        %v1820 = vmul.f32 %v1523, %v592
        %v1821 = vmul.f32 %v1527, %v593
        %v1822 = vmul.f32 %v1523, %v594
        %v1823 = vmul.f32 %v1527, %v595
        %v1824 = vmul.f32 %v1531, %v592
        %v1825 = vmul.f32 %v1535, %v593
        %v1826 = vmul.f32 %v1531, %v594
        %v1827 = vmul.f32 %v1535, %v595
        %v1828 = vmul.f32 %v1539, %v592
        %v1829 = vmul.f32 %v1543, %v593
        %v1830 = vmul.f32 %v1539, %v594
        %v1831 = vmul.f32 %v1543, %v595
        %v1832 = vpack.c.bf16 %v1642, %v1640
        %v1833 = vpack.c.bf16 %v1643, %v1641
        %v1834 = vpack.c.bf16 %v1646, %v1644
        %v1835 = vpack.c.bf16 %v1647, %v1645
        %v1836 = vpack.c.bf16 %v1650, %v1648
        %v1837 = vpack.c.bf16 %v1651, %v1649
        %v1838 = vpack.c.bf16 %v1654, %v1652
        %v1839 = vpack.c.bf16 %v1655, %v1653
        %v1840 = vpack.c.bf16 %v1658, %v1656
        %v1841 = vpack.c.bf16 %v1659, %v1657
        %v1842 = vpack.c.bf16 %v1662, %v1660
        %v1843 = vpack.c.bf16 %v1663, %v1661
        %v1844 = vpack.c.bf16 %v1666, %v1664
        %v1845 = vpack.c.bf16 %v1667, %v1665
        %v1846 = vpack.c.bf16 %v1670, %v1668
        %v1847 = vpack.c.bf16 %v1671, %v1669
        %v1848 = vpack.c.bf16 %v1674, %v1672
        %v1849 = vpack.c.bf16 %v1675, %v1673
        %v1850 = vpack.c.bf16 %v1678, %v1676
        %v1851 = vpack.c.bf16 %v1679, %v1677
        %v1852 = vpack.c.bf16 %v1682, %v1680
        %v1853 = vpack.c.bf16 %v1683, %v1681
        %v1854 = vpack.c.bf16 %v1686, %v1684
        %v1855 = vpack.c.bf16 %v1687, %v1685
        %v1856 = vpack.c.bf16 %v1690, %v1688
        %v1857 = vpack.c.bf16 %v1691, %v1689
        %v1858 = vpack.c.bf16 %v1694, %v1692
        %v1859 = vpack.c.bf16 %v1695, %v1693
        %v1860 = vpack.c.bf16 %v1698, %v1696
        %v1861 = vpack.c.bf16 %v1699, %v1697
        %v1862 = vpack.c.bf16 %v1702, %v1700
        %v1863 = vpack.c.bf16 %v1703, %v1701
        %v1864 = vpack.c.bf16 %v1706, %v1704
        %v1865 = vpack.c.bf16 %v1707, %v1705
        %v1866 = vpack.c.bf16 %v1710, %v1708
        %v1867 = vpack.c.bf16 %v1711, %v1709
        %v1868 = vpack.c.bf16 %v1714, %v1712
        %v1869 = vpack.c.bf16 %v1715, %v1713
        %v1870 = vpack.c.bf16 %v1718, %v1716
        %v1871 = vpack.c.bf16 %v1719, %v1717
        %v1872 = vpack.c.bf16 %v1722, %v1720
        %v1873 = vpack.c.bf16 %v1723, %v1721
        %v1874 = vpack.c.bf16 %v1726, %v1724
        %v1875 = vpack.c.bf16 %v1727, %v1725
        %v1876 = vpack.c.bf16 %v1730, %v1728
        %v1877 = vpack.c.bf16 %v1731, %v1729
        %v1878 = vpack.c.bf16 %v1734, %v1732
        %v1879 = vpack.c.bf16 %v1735, %v1733
        %v1880 = vpack.c.bf16 %v1738, %v1736
        %v1881 = vpack.c.bf16 %v1739, %v1737
        %v1882 = vpack.c.bf16 %v1742, %v1740
        %v1883 = vpack.c.bf16 %v1743, %v1741
        %v1884 = vpack.c.bf16 %v1746, %v1744
        %v1885 = vpack.c.bf16 %v1747, %v1745
        %v1886 = vpack.c.bf16 %v1750, %v1748
        %v1887 = vpack.c.bf16 %v1751, %v1749
        %v1888 = vpack.c.bf16 %v1754, %v1752
        %v1889 = vpack.c.bf16 %v1755, %v1753
        %v1890 = vpack.c.bf16 %v1758, %v1756
        %v1891 = vpack.c.bf16 %v1759, %v1757
        %v1892 = vpack.c.bf16 %v1762, %v1760
        %v1893 = vpack.c.bf16 %v1763, %v1761
        %v1894 = vpack.c.bf16 %v1766, %v1764
        %v1895 = vpack.c.bf16 %v1767, %v1765
        %v1896 = vpack.c.bf16 %v1770, %v1768
        %v1897 = vpack.c.bf16 %v1771, %v1769
        %v1898 = vpack.c.bf16 %v1774, %v1772
        %v1899 = vpack.c.bf16 %v1775, %v1773
        %v1900 = vpack.c.bf16 %v1778, %v1776
        %v1901 = vpack.c.bf16 %v1779, %v1777
        %v1902 = vpack.c.bf16 %v1782, %v1780
        %v1903 = vpack.c.bf16 %v1783, %v1781
        %v1904 = vpack.c.bf16 %v1786, %v1784
        %v1905 = vpack.c.bf16 %v1787, %v1785
        %v1906 = vpack.c.bf16 %v1790, %v1788
        %v1907 = vpack.c.bf16 %v1791, %v1789
        %v1908 = vpack.c.bf16 %v1794, %v1792
        %v1909 = vpack.c.bf16 %v1795, %v1793
        %v1910 = vpack.c.bf16 %v1798, %v1796
        %v1911 = vpack.c.bf16 %v1799, %v1797
        %v1912 = vpack.c.bf16 %v1802, %v1800
        %v1913 = vpack.c.bf16 %v1803, %v1801
        %v1914 = vpack.c.bf16 %v1806, %v1804
        %v1915 = vpack.c.bf16 %v1807, %v1805
        %v1916 = vpack.c.bf16 %v1810, %v1808
        %v1917 = vpack.c.bf16 %v1811, %v1809
        %v1918 = vpack.c.bf16 %v1814, %v1812
        %v1919 = vpack.c.bf16 %v1815, %v1813
        %v1920 = vpack.c.bf16 %v1818, %v1816
        %v1921 = vpack.c.bf16 %v1819, %v1817
        %v1922 = vpack.c.bf16 %v1822, %v1820
        %v1923 = vpack.c.bf16 %v1823, %v1821
        %v1924 = vpack.c.bf16 %v1826, %v1824
        %v1925 = vpack.c.bf16 %v1827, %v1825
        %v1926 = vpack.c.bf16 %v1830, %v1828
        %v1927 = vpack.c.bf16 %v1831, %v1829
        %v1928 = vld [vmem:[%s308] sm:$0xff]
        %v1929 = vld [vmem:[%s308 + $0x8] sm:$0xff]
        %v1930 = vld [vmem:[%s308 + $0x10] sm:$0xff]
        %v1934 = vunpack.c.l.b16 %v1928
        %v1935 = vunpack.c.h.b16 %v1928
        %v1936 = vunpack.c.l.b16 %v1929
        %v1937 = vunpack.c.h.b16 %v1929
        %v1938 = vunpack.c.l.b16 %v1930
        %v1939 = vunpack.c.h.b16 %v1930
        %v1940 = vpack.c.b16 %v1934, %v1934
        %v1941 = vpack.c.b16 %v1935, %v1935
        %v1942 = vpack.c.b16 %v1936, %v1936
        %v1943 = vpack.c.b16 %v1937, %v1937
        %v1944 = vpack.c.b16 %v1938, %v1938
        %v1945 = vpack.c.b16 %v1939, %v1939
        %1952 = vmatprep.subr.bf16.mxu0 %v1833
        %1953 = vmatpush1.bf16.msra.mxu0 %v1832
        %1954 = vmatprep.subr.bf16.mxu0 %v1835
        %1955 = vmatpush1.bf16.msra.mxu0 %v1834
        %1956 = vmatprep.subr.bf16.mxu0 %v1837
        %1957 = vmatpush1.bf16.msra.mxu0 %v1836
        %1958 = vmatprep.subr.bf16.mxu0 %v1839
        %1959 = vmatpush1.bf16.msra.mxu0 %v1838
        %1960 = vmatprep.subr.bf16.mxu0 %v1841
        %1961 = vmatpush1.bf16.msra.mxu0 %v1840
        %1962 = vmatprep.subr.bf16.mxu0 %v1843
        %1963 = vmatpush1.bf16.msra.mxu0 %v1842
        %1964 = vmatprep.subr.bf16.mxu0 %v1845
        %1965 = vmatpush1.bf16.msra.mxu0 %v1844
        %1966 = vmatprep.subr.bf16.mxu0 %v1847
        %1967 = vmatpush1.bf16.msra.mxu0 %v1846
        %1968 = vmatprep.subr.bf16.mxu0 %v1849
        %1969 = vmatpush1.bf16.msra.mxu0 %v1848
        %1970 = vmatprep.subr.bf16.mxu0 %v1851
        %1971 = vmatpush1.bf16.msra.mxu0 %v1850
        %1972 = vmatprep.subr.bf16.mxu0 %v1853
        %1973 = vmatpush1.bf16.msra.mxu0 %v1852
        %1974 = vmatprep.subr.bf16.mxu0 %v1855
        %1975 = vmatpush1.bf16.msra.mxu0 %v1854
        %1976 = vmatprep.subr.bf16.mxu0 %v1857
        %1977 = vmatpush1.bf16.msra.mxu0 %v1856
        %1978 = vmatprep.subr.bf16.mxu0 %v1859
        %1979 = vmatpush1.bf16.msra.mxu0 %v1858
        %1980 = vmatprep.subr.bf16.mxu0 %v1861
        %1981 = vmatpush1.bf16.msra.mxu0 %v1860
        %1982 = vmatprep.subr.bf16.mxu0 %v1863
        %1983 = vmatpush1.bf16.msra.mxu0 %v1862
        %1984 = vmatprep.mubr.bf16.mxu0 %v1941
        %1985 = vmatmul.mubr.bf16.gmra.mrb[0].mxu0 %v1940
        %v1986 = vpop.f32.mrb[0].mxu0
        %v1987 = vadd.f32 0.0, %v1986
        %v1988 = vpop.f32.mrb[0].mxu0
        %v1989 = vadd.f32 0.0, %v1988
        %v1990 = vpop.f32.mrb[0].mxu0
        %v1991 = vpop.f32.mrb[0].mxu0
        %1992 = vdwg.mxu0
        %1993 = vmatprep.subr.bf16.mxu0 %v1865
        %1994 = vmatpush1.bf16.msra.mxu0 %v1864
        %1995 = vmatprep.subr.bf16.mxu0 %v1867
        %1996 = vmatpush1.bf16.msra.mxu0 %v1866
        %1997 = vmatprep.subr.bf16.mxu0 %v1869
        %1998 = vmatpush1.bf16.msra.mxu0 %v1868
        %1999 = vmatprep.subr.bf16.mxu0 %v1871
        %2000 = vmatpush1.bf16.msra.mxu0 %v1870
        %2001 = vmatprep.subr.bf16.mxu0 %v1873
        %2002 = vmatpush1.bf16.msra.mxu0 %v1872
        %2003 = vmatprep.subr.bf16.mxu0 %v1875
        %2004 = vmatpush1.bf16.msra.mxu0 %v1874
        %2005 = vmatprep.subr.bf16.mxu0 %v1877
        %2006 = vmatpush1.bf16.msra.mxu0 %v1876
        %2007 = vmatprep.subr.bf16.mxu0 %v1879
        %2008 = vmatpush1.bf16.msra.mxu0 %v1878
        %2009 = vmatprep.subr.bf16.mxu0 %v1881
        %2010 = vmatpush1.bf16.msra.mxu0 %v1880
        %2011 = vmatprep.subr.bf16.mxu0 %v1883
        %2012 = vmatpush1.bf16.msra.mxu0 %v1882
        %2013 = vmatprep.subr.bf16.mxu0 %v1885
        %2014 = vmatpush1.bf16.msra.mxu0 %v1884
        %2015 = vmatprep.subr.bf16.mxu0 %v1887
        %2016 = vmatpush1.bf16.msra.mxu0 %v1886
        %2017 = vmatprep.subr.bf16.mxu0 %v1889
        %2018 = vmatpush1.bf16.msra.mxu0 %v1888
        %2019 = vmatprep.subr.bf16.mxu0 %v1891
        %2020 = vmatpush1.bf16.msra.mxu0 %v1890
        %2021 = vmatprep.subr.bf16.mxu0 %v1893
        %2022 = vmatpush1.bf16.msra.mxu0 %v1892
        %2023 = vmatprep.subr.bf16.mxu0 %v1895
        %2024 = vmatpush1.bf16.msra.mxu0 %v1894
        %2025 = vmatprep.mubr.bf16.mxu0 %v1943
        %2026 = vmatmul.mubr.bf16.gmra.mrb[0].mxu0 %v1942
        %v2027 = vpop.f32.mrb[0].mxu0
        %v2028 = vadd.f32 %v1987, %v2027
        %v2029 = vpop.f32.mrb[0].mxu0
        %v2030 = vadd.f32 %v1989, %v2029
        %v2031 = vpop.f32.mrb[0].mxu0
        %v2032 = vpop.f32.mrb[0].mxu0
        %2033 = vdwg.mxu0
        %2034 = vmatprep.subr.bf16.mxu0 %v1897
        %2035 = vmatpush1.bf16.msra.mxu0 %v1896
        %2036 = vmatprep.subr.bf16.mxu0 %v1899
        %2037 = vmatpush1.bf16.msra.mxu0 %v1898
        %2038 = vmatprep.subr.bf16.mxu0 %v1901
        %2039 = vmatpush1.bf16.msra.mxu0 %v1900
        %2040 = vmatprep.subr.bf16.mxu0 %v1903
        %2041 = vmatpush1.bf16.msra.mxu0 %v1902
        %2042 = vmatprep.subr.bf16.mxu0 %v1905
        %2043 = vmatpush1.bf16.msra.mxu0 %v1904
        %2044 = vmatprep.subr.bf16.mxu0 %v1907
        %2045 = vmatpush1.bf16.msra.mxu0 %v1906
        %2046 = vmatprep.subr.bf16.mxu0 %v1909
        %2047 = vmatpush1.bf16.msra.mxu0 %v1908
        %2048 = vmatprep.subr.bf16.mxu0 %v1911
        %2049 = vmatpush1.bf16.msra.mxu0 %v1910
        %2050 = vmatprep.subr.bf16.mxu0 %v1913
        %2051 = vmatpush1.bf16.msra.mxu0 %v1912
        %2052 = vmatprep.subr.bf16.mxu0 %v1915
        %2053 = vmatpush1.bf16.msra.mxu0 %v1914
        %2054 = vmatprep.subr.bf16.mxu0 %v1917
        %2055 = vmatpush1.bf16.msra.mxu0 %v1916
        %2056 = vmatprep.subr.bf16.mxu0 %v1919
        %2057 = vmatpush1.bf16.msra.mxu0 %v1918
        %2058 = vmatprep.subr.bf16.mxu0 %v1921
        %2059 = vmatpush1.bf16.msra.mxu0 %v1920
        %2060 = vmatprep.subr.bf16.mxu0 %v1923
        %2061 = vmatpush1.bf16.msra.mxu0 %v1922
        %2062 = vmatprep.subr.bf16.mxu0 %v1925
        %2063 = vmatpush1.bf16.msra.mxu0 %v1924
        %2064 = vmatprep.subr.bf16.mxu0 %v1927
        %2065 = vmatpush1.bf16.msra.mxu0 %v1926
        %2066 = vmatprep.mubr.bf16.mxu0 %v1945
        %2067 = vmatmul.mubr.bf16.gmra.mrb[0].mxu0 %v1944
        %v2068 = vpop.f32.mrb[0].mxu0
        %v2069 = vadd.f32 %v2028, %v2068
        %v2070 = vpop.f32.mrb[0].mxu0
        %v2071 = vadd.f32 %v2030, %v2070
        %v2072 = vpop.f32.mrb[0].mxu0
        %v2073 = vpop.f32.mrb[0].mxu0
        %2074 = vdwg.mxu0
        %v2075 = vld [vmem:[%s2] sm:$0xf]
        %v2076 = vld [vmem:[%s2 + $0x4] sm:$0xf]
        %v2077 = vld [vmem:[%s2 + $0x8] sm:$0xf]
        %v2078 = vld [vmem:[%s2 + $0xc] sm:$0xf]
        %v2079 = vpack.c.bf16 %v2069, %v2069
        %v2080 = vpack.c.bf16 %v2071, %v2071
        %v2081 = vld [vmem:[%s3] sm:$0xff]
        %v2082 = vld [vmem:[%s3 + $0x8] sm:$0xff]
        %v2083 = vld [vmem:[%s3 + $0x10] sm:$0xff]
        %v2084 = vld [vmem:[%s3 + $0x18] sm:$0xff]
        %2086 = vset.pattern.permute.xlu0 0
        %2087 = vperm.xlu0 %2086, %v2081
        %v2088 = vpop.permute.xlu0 %2087
        %2091 = vset.pattern.permute.xlu0 0
        %2092 = vperm.xlu0 %2091, %v2082
        %v2093 = vpop.permute.xlu0 %2092
        %2096 = vset.pattern.permute.xlu0 0
        %2097 = vperm.xlu0 %2096, %v2083
        %v2098 = vpop.permute.xlu0 %2097
        %2101 = vset.pattern.permute.xlu0 0
        %2102 = vperm.xlu0 %2101, %v2084
        %v2103 = vpop.permute.xlu0 %2102
        %v2109 = vunpack.c.l.b16 %v2075
        %v2110 = vunpack.c.l.b16 %v2076
        %v2111 = vunpack.c.l.b16 %v2077
        %v2112 = vunpack.c.l.b16 %v2078
        %v2113 = vpack.c.b16 %v2110, %v2109
        %v2114 = vpack.c.b16 %v2112, %v2111
        %vm2115 = vcmask 64512
        %v2117 = vsel %vm2115, %v2113, 0
        %v2120 = vsel %vm2115, %v2114, 0
        %vm2122 = vcmask 1043456
        %v2124 = vsel %vm2122, %v2079, 0
        %v2127 = vsel %vm2122, %v2080, 0
        %2129 = vmatprep.subr.bf16.mxu0 %v2127
        %2130 = vmatpush1.bf16.msra.mxu0 %v2124
        %2131 = vmatprep.subr.bf16.mxu0 0
        %2132 = vmatpush1.bf16.msra.mxu0 0
        %2133 = vmatprep.subr.bf16.mxu0 0
        %2134 = vmatpush1.bf16.msra.mxu0 0
        %2135 = vmatprep.subr.bf16.mxu0 0
        %2136 = vmatpush1.bf16.msra.mxu0 0
        %2137 = vmatprep.subr.bf16.mxu0 0
        %2138 = vmatpush1.bf16.msra.mxu0 0
        %2139 = vmatprep.subr.bf16.mxu0 0
        %2140 = vmatpush1.bf16.msra.mxu0 0
        %2141 = vmatprep.subr.bf16.mxu0 0
        %2142 = vmatpush1.bf16.msra.mxu0 0
        %2143 = vmatprep.subr.bf16.mxu0 0
        %2144 = vmatpush1.bf16.msra.mxu0 0
        %2145 = vmatprep.subr.bf16.mxu0 0
        %2146 = vmatpush1.bf16.msra.mxu0 0
        %2147 = vmatprep.subr.bf16.mxu0 0
        %2148 = vmatpush1.bf16.msra.mxu0 0
        %2149 = vmatprep.subr.bf16.mxu0 0
        %2150 = vmatpush1.bf16.msra.mxu0 0
        %2151 = vmatprep.subr.bf16.mxu0 0
        %2152 = vmatpush1.bf16.msra.mxu0 0
        %2153 = vmatprep.subr.bf16.mxu0 0
        %2154 = vmatpush1.bf16.msra.mxu0 0
        %2155 = vmatprep.subr.bf16.mxu0 0
        %2156 = vmatpush1.bf16.msra.mxu0 0
        %2157 = vmatprep.subr.bf16.mxu0 0
        %2158 = vmatpush1.bf16.msra.mxu0 0
        %2159 = vmatprep.subr.bf16.mxu0 0
        %2160 = vmatpush1.bf16.msra.mxu0 0
        %2161 = vmatprep.mubr.bf16.mxu0 0
        %2162 = vmatmul.mubr.bf16.gmra.mrb[0].mxu0 %v2117
        %v2163 = vpop.f32.mrb[0].mxu0
        %v2164 = vadd.f32 %v2088, %v2163
        %v2165 = vpop.f32.mrb[0].mxu0
        %v2166 = vadd.f32 %v2088, %v2165
        %v2167 = vpop.f32.mrb[0].mxu0
        %v2168 = vadd.f32 %v2093, %v2167
        %v2169 = vpop.f32.mrb[0].mxu0
        %v2170 = vadd.f32 %v2093, %v2169
        %2171 = vmatprep.mubr.bf16.mxu0 0
        %2172 = vmatmul.mubr.bf16.gmra.mrb[0].mxu0 %v2120
        %v2173 = vpop.f32.mrb[0].mxu0
        %v2174 = vadd.f32 %v2098, %v2173
        %v2175 = vpop.f32.mrb[0].mxu0
        %v2176 = vadd.f32 %v2098, %v2175
        %v2177 = vpop.f32.mrb[0].mxu0
        %v2178 = vadd.f32 %v2103, %v2177
        %v2179 = vpop.f32.mrb[0].mxu0
        %v2180 = vadd.f32 %v2103, %v2179
        %2181 = vdwg.mxu0
        %v2182 = vmax.f32 %v2164, 0.0
        %v2183 = vmax.f32 %v2166, 0.0
        %v2184 = vmax.f32 %v2168, 0.0
        %v2185 = vmax.f32 %v2170, 0.0
        %v2186 = vmax.f32 %v2174, 0.0
        %v2187 = vmax.f32 %v2176, 0.0
        %v2188 = vmax.f32 %v2178, 0.0
        %v2189 = vmax.f32 %v2180, 0.0
        %v2190 = vand.u32 2147483647, %v2164
        %v2191 = vand.u32 2147483647, %v2166
        %v2192 = vand.u32 2147483647, %v2168
        %v2193 = vand.u32 2147483647, %v2170
        %v2194 = vand.u32 2147483647, %v2174
        %v2195 = vand.u32 2147483647, %v2176
        %v2196 = vand.u32 2147483647, %v2178
        %v2197 = vand.u32 2147483647, %v2180
        %v2198 = vsub.f32 0.0, %v2190
        %v2199 = vsub.f32 0.0, %v2191
        %v2200 = vsub.f32 0.0, %v2192
        %v2201 = vsub.f32 0.0, %v2193
        %v2202 = vsub.f32 0.0, %v2194
        %v2203 = vsub.f32 0.0, %v2195
        %v2204 = vsub.f32 0.0, %v2196
        %v2205 = vsub.f32 0.0, %v2197
        %v2206 = vmul.f32 %v2198, 1.442695
        %v2207 = vpow.pop %v2206
        %v2208 = vmul.f32 %v2199, 1.442695
        %v2209 = vpow.pop %v2208
        %v2210 = vmul.f32 %v2200, 1.442695
        %v2211 = vpow.pop %v2210
        %v2212 = vmul.f32 %v2201, 1.442695
        %v2213 = vpow.pop %v2212
        %v2214 = vmul.f32 %v2202, 1.442695
        %v2215 = vpow.pop %v2214
        %v2216 = vmul.f32 %v2203, 1.442695
        %v2217 = vpow.pop %v2216
        %v2218 = vmul.f32 %v2204, 1.442695
        %v2219 = vpow.pop %v2218
        %v2220 = vmul.f32 %v2205, 1.442695
        %v2221 = vpow.pop %v2220
        %v2222 = vadd.f32 %v2207, 1.0
        %v2223 = vadd.f32 %v2209, 1.0
        %v2224 = vadd.f32 %v2211, 1.0
        %v2225 = vadd.f32 %v2213, 1.0
        %v2226 = vadd.f32 %v2215, 1.0
        %v2227 = vadd.f32 %v2217, 1.0
        %v2228 = vadd.f32 %v2219, 1.0
        %v2229 = vadd.f32 %v2221, 1.0
        %v2230 = vlog2.pop %v2222
        %v2231 = vmul.f32 %v2230, 0.6931472
        %v2232 = vlog2.pop %v2223
        %v2233 = vmul.f32 %v2232, 0.6931472
        %v2234 = vlog2.pop %v2224
        %v2235 = vmul.f32 %v2234, 0.6931472
        %v2236 = vlog2.pop %v2225
        %v2237 = vmul.f32 %v2236, 0.6931472
        %v2238 = vlog2.pop %v2226
        %v2239 = vmul.f32 %v2238, 0.6931472
        %v2240 = vlog2.pop %v2227
        %v2241 = vmul.f32 %v2240, 0.6931472
        %v2242 = vlog2.pop %v2228
        %v2243 = vmul.f32 %v2242, 0.6931472
        %v2244 = vlog2.pop %v2229
        %v2245 = vmul.f32 %v2244, 0.6931472
        %v2246 = vadd.f32 %v2182, %v2231
        %v2247 = vadd.f32 %v2183, %v2233
        %v2248 = vadd.f32 %v2184, %v2235
        %v2249 = vadd.f32 %v2185, %v2237
        %v2250 = vadd.f32 %v2186, %v2239
        %v2251 = vadd.f32 %v2187, %v2241
        %v2252 = vadd.f32 %v2188, %v2243
        %v2253 = vadd.f32 %v2189, %v2245
        %v2254 = vld [vmem:[%s4] sm:$0x3]
        %v2255 = vpack.c.bf16 %v2248, %v2246
        %v2256 = vpack.c.bf16 %v2249, %v2247
        %v2257 = vpack.c.bf16 %v2252, %v2250
        %v2258 = vpack.c.bf16 %v2253, %v2251
        %v2259 = vld [vmem:[%s5] sm:$0xf]
        %2261 = vset.pattern.permute.xlu0 0
        %2262 = vperm.xlu0 %2261, %v2259
        %v2263 = vpop.permute.xlu0 %2262
        %vm2265 = vcmask 261120
        %v2267 = vsel %vm2265, %v2254, 0
        %2269 = vmatprep.subr.bf16.mxu0 %v2256
        %2270 = vmatpush1.bf16.msra.mxu0 %v2255
        %2271 = vmatprep.subr.bf16.mxu0 %v2258
        %2272 = vmatpush1.bf16.msra.mxu0 %v2257
        %2273 = vmatprep.subr.bf16.mxu0 0
        %2274 = vmatpush1.bf16.msra.mxu0 0
        %2275 = vmatprep.subr.bf16.mxu0 0
        %2276 = vmatpush1.bf16.msra.mxu0 0
        %2277 = vmatprep.subr.bf16.mxu0 0
        %2278 = vmatpush1.bf16.msra.mxu0 0
        %2279 = vmatprep.subr.bf16.mxu0 0
        %2280 = vmatpush1.bf16.msra.mxu0 0
        %2281 = vmatprep.subr.bf16.mxu0 0
        %2282 = vmatpush1.bf16.msra.mxu0 0
        %2283 = vmatprep.subr.bf16.mxu0 0
        %2284 = vmatpush1.bf16.msra.mxu0 0
        %2285 = vmatprep.subr.bf16.mxu0 0
        %2286 = vmatpush1.bf16.msra.mxu0 0
        %2287 = vmatprep.subr.bf16.mxu0 0
        %2288 = vmatpush1.bf16.msra.mxu0 0
        %2289 = vmatprep.subr.bf16.mxu0 0
        %2290 = vmatpush1.bf16.msra.mxu0 0
        %2291 = vmatprep.subr.bf16.mxu0 0
        %2292 = vmatpush1.bf16.msra.mxu0 0
        %2293 = vmatprep.subr.bf16.mxu0 0
        %2294 = vmatpush1.bf16.msra.mxu0 0
        %2295 = vmatprep.subr.bf16.mxu0 0
        %2296 = vmatpush1.bf16.msra.mxu0 0
        %2297 = vmatprep.subr.bf16.mxu0 0
        %2298 = vmatpush1.bf16.msra.mxu0 0
        %2299 = vmatprep.subr.bf16.mxu0 0
        %2300 = vmatpush1.bf16.msra.mxu0 0
        %2301 = vmatprep.mubr.bf16.mxu0 0
        %2302 = vmatmul.mubr.bf16.gmra.mrb[0].mxu0 %v2267
        %v2303 = vpop.f32.mrb[0].mxu0
        %v2304 = vadd.f32 %v2263, %v2303
        %v2305 = vpop.f32.mrb[0].mxu0
        %v2306 = vadd.f32 %v2263, %v2305
        %v2307 = vpop.f32.mrb[0].mxu0
        %v2308 = vpop.f32.mrb[0].mxu0
        %2309 = vdwg.mxu0
        %v2312 = vcombine.low %v2304, %v2306
        %v2314 = vunpack.c.l.s4 1966171168
        %v2315 = vunpack.c.0.s8 %v2314
        %v2316 = vlaneseq
        %v2317 = vshrl.u32 %v2316, 7
        %v2318 = vsub.s32 %v2315, %v2317
        %v2319 = vrot.slane %v2312, %v2318
        %v2321 = vunpack.c.l.s4 1966171168
        %v2322 = vunpack.c.0.s8 %v2321
        %v2323 = vlaneseq
        %v2324 = vshrl.u32 %v2323, 7
        %v2325 = vsub.s32 %v2322, %v2324
        %v2326 = vrot.slane %v2319, %v2325
        %v2328 = vlaneseq
        %vm2329 = vcmp.ge.s32.totalorder %v2328, 0
        %vm2330 = vcmp.lt.s32.totalorder %v2328, 256
        %vm2331 = vmand %vm2329, %vm2330
        %2332 = vst.msk [vmem:[%s302] ss:$4 sm:$0x3] %vm2331, %v2326
        %v2333 = vsub.f32 0.0, %v2304
        %v2334 = vsub.f32 0.0, %v2306
        %v2335 = vmul.f32 %v2333, 1.442695
        %v2336 = vpow.pop %v2335
        %v2337 = vmul.f32 %v2334, 1.442695
        %v2338 = vpow.pop %v2337
        %v2339 = vadd.f32 %v2336, 1.0
        %v2340 = vadd.f32 %v2338, 1.0
        %v2341 = vrcp.pop %v2339
        %v2342 = vmul.f32 1.0, %v2341
        %v2343 = vrcp.pop %v2340
        %v2344 = vmul.f32 1.0, %v2343
        %v2345 = vmul.f32 %v2342, 1.002
        %v2346 = vmul.f32 %v2344, 1.002
        %v2347 = vsub.f32 %v2345, 0.001
        %v2348 = vsub.f32 %v2346, 0.001
        %v2351 = vcombine.low %v2347, %v2348
        %2353 = vst [vmem:[%s302] sm:$0xee] %v2351
        %s2354 = sand.u32 %s183, 1
        %s2355 = scalar_lea.sflag [#allocation4], %s2354
        %s2356 = sand.u32 %s183, 1
        %s2357 = smul.addr %s2356, 8
        %s2358 = scalar_lea.vmem [#allocation5], %s2357
        // Predicated region
        $region49: #{tpu_custom_call.1} parent=43 // pred_check
          %p2359 = pneg %p193
        $region50: #{tpu_custom_call.1} parent=43 // pred_check_branch
          %2361 = sbr.rel (%p2359) target = $region52
        $region51: #{tpu_custom_call.1} parent=43 // pred_region
          %s2362 = smul.u32 2, %s28
          %s2364 = ssub.s32 128, 128
          %2365 = vsyncadd %s2355, %s2364
          %s2366 = smul.addr %s27, 2
          %s2367 = sadd.s32 %s2362, %s2366
          %s2368 = smul.addr %s2367, 64
          %s2369 = scalar_lea.hbm %s6, %s2368
          %s2371 = sshll.u32 %s2358, 4
          %s2372 = int_to_ptr.vmem [resolvable:$true] %s2371
          %2374 = dma.vmem_to_hbm [thread:$0]  %s2372, 128, %s2369, %s2355
        $region52: #{tpu_custom_call.1} parent=43 // pred_fallthru
          _
      $region44: #{tpu_custom_call.1} parent=5 // pred_fallthru
        _
      %p2375 = scmp.le.s32.totalorder 2, %s18
      // Predicated region
      $region53: #{tpu_custom_call.1} parent=5 // pred_check
        %p2376 = pneg %p2375
      $region54: #{tpu_custom_call.1} parent=5 // pred_check_branch
        %2378 = sbr.rel (%p2376) target = $region56
      $region55: #{tpu_custom_call.1} parent=5 // pred_region
        %s2379 = ssub.s32 %s18, 2
        // Predicated region
        $region57: #{tpu_custom_call.1} parent=55 // pred_check
          %p2380 = pneg %p199
        $region58: #{tpu_custom_call.1} parent=55 // pred_check_branch
          %2382 = sbr.rel (%p2380) target = $region60
        $region59: #{tpu_custom_call.1} parent=55 // pred_region
          %s2383 = sand.u32 %s184, 1
          %s2384 = scalar_lea.sflag [#allocation4], %s2383
          %s2385 = sand.u32 %s184, 1
          %s2386 = smul.addr %s2385, 8
          %s2387 = scalar_lea.vmem [#allocation5], %s2386
          %2388 = dma.done %s2384, 128
        $region60: #{tpu_custom_call.1} parent=55 // pred_fallthru
          _
      $region56: #{tpu_custom_call.1} parent=5 // pred_fallthru
        _
    $region6: #{tpu_custom_call.1} parent=1 // loop_footer
      %s22 = sadd.s32 1, %s18
    $region7: #{tpu_custom_call.1} parent=1 // loop_footer_branch
      %17 = sbr.rel target = $region3
    $region8: #{tpu_custom_call.1} parent=1 // loop_exit
      _
    %2389 = vsyncpa [#allocation3], 1
    %s2390 = scalar_lea.sflag [#allocation3], 1
    %2391 = vsyncpa %s2390, 1
    %2392 = vsyncpa [#allocation4], 1
    %s2393 = scalar_lea.sflag [#allocation4], 1
    %2394 = vsyncpa %s2393, 1

</llo_original>
